<compile_context>
chip_gen: v7x
topology: tpu7x:2x2x1
jax: 0.10.0
libtpu: 0.0.40
codegen_flags: <defaults>
</compile_context>

<pallas_src>
import jax
import jax.numpy as jnp
import numpy as np
from jax import lax
from jax.experimental import pallas as pl
from jax.experimental.pallas import tpu as pltpu


# ----------------------------- problem sizes --------------------------------
B = 2                      # batch
C = 32                     # img_channels
RED = 16                   # reduction
HID = C // RED             # table_proj hidden width (= 2)
TD = 16                    # table_dim
DD, HH, WW = 4, 8, 16      # image feature volume
S = DD * HH * WW           # flattened spatial size (= 512, lane-aligned)
K, P = 7, 3                # Conv3d kernel / padding
CH = 8                     # channel chunk = f32 sublane height


# ---------------- Conv3d -> dense operators (weight-only folding) -----------
def conv3d_to_dense(wconv, D, H, W):
    """Lower Conv3d(in=2, out=1, k=7, pad=3) to two dense (S, S) operators so
    that  max_pool @ M_max + mean_pool @ M_mean  equals the flattened conv
    output (bias excluded).  Pure host-side function of the conv weights."""
    wconv = np.asarray(wconv, dtype=np.float32)            # (1, 2, K, K, K)
    s = D * H * W
    M = np.zeros((2, s, s), dtype=np.float32)
    d_o, h_o, w_o = np.meshgrid(np.arange(D), np.arange(H), np.arange(W),
                                indexing="ij")
    s_out = ((d_o * H + h_o) * W + w_o).ravel()
    d_o, h_o, w_o = d_o.ravel(), h_o.ravel(), w_o.ravel()
    for kd in range(K):
        d_i = d_o + kd - P
        for kh in range(K):
            h_i = h_o + kh - P
            for kw in range(K):
                w_i = w_o + kw - P
                ok = ((d_i >= 0) & (d_i < D) & (h_i >= 0) & (h_i < H)
                      & (w_i >= 0) & (w_i < W))
                s_in = (d_i[ok] * H + h_i[ok]) * W + w_i[ok]
                so = s_out[ok]
                M[0, s_in, so] += wconv[0, 0, kd, kh, kw]   # channel 0 = max
                M[1, s_in, so] += wconv[0, 1, kd, kh, kw]   # channel 1 = mean
    return M[0], M[1]                                        # each (S, S)


# --------------------------------- kernel -----------------------------------
def _cbam_kernel(img_ref, chan_ref, mmax_ref, mmean_ref, cb_ref, out_ref):
    nB, nC, nS = img_ref.shape
    n_chunks = nC // CH

    mx = jnp.full((nB, nS), -jnp.inf, dtype=jnp.float32)
    sm = jnp.zeros((nB, nS), dtype=jnp.float32)

    # Pass 1: channel gating, written straight through to out_ref, while
    # accumulating the channel max / mean pools (sublane reductions).
    for ci in range(n_chunks):
        c0 = ci * CH
        xc = img_ref[:, c0:c0 + CH, :] * chan_ref[:, c0:c0 + CH, :]
        out_ref[:, c0:c0 + CH, :] = xc
        mx = jnp.maximum(mx, jnp.max(xc, axis=1))
        sm = sm + jnp.sum(xc, axis=1)
    mn = sm * (1.0 / nC)                                     # mean pool (B, S)

    # Conv3d(2->1, k=7, pad=3) as two dense MXU matmuls (bf16 weights, f32 acc).
    conv = (jnp.dot(mx.astype(jnp.bfloat16), mmax_ref[...],
                    preferred_element_type=jnp.float32)
            + jnp.dot(mn.astype(jnp.bfloat16), mmean_ref[...],
                      preferred_element_type=jnp.float32)
            + cb_ref[0])
    sp = 1.0 / (1.0 + jnp.exp(-conv))                        # (B, S) spatial gate

    # Pass 2: apply the spatial gate to the already channel-gated features.
    for ci in range(n_chunks):
        c0 = ci * CH
        out_ref[:, c0:c0 + CH, :] = out_ref[:, c0:c0 + CH, :] * sp[:, None, :]


# --------------------------------- wrapper ----------------------------------
@jax.jit
def cross_modal_cbam(img, table, w1, b1, w2, b2, m_max, m_mean, bconv):
    nB, nC, d, h, w = img.shape
    nS = d * h * w

    # Tiny table MLP -> per-channel gate, done in XLA (off the kernel's
    # serial prologue; its masked-lane shapes are not worth kernel cycles).
    hid = jnp.maximum(table.astype(jnp.float32) @ w1 + b1, 0.0)
    chan = jax.nn.sigmoid(hid @ w2 + b2)                     # (B, C)
    chan3 = chan[:, :, None].astype(jnp.float32)             # (B, C, 1)

    img2 = img.reshape(nB, nC, nS).astype(jnp.float32)
    cb = jnp.reshape(bconv, (1,)).astype(jnp.float32)

    vmem = pl.BlockSpec(memory_space=pltpu.MemorySpace.VMEM)
    smem = pl.BlockSpec(memory_space=pltpu.MemorySpace.SMEM)

    out = pl.pallas_call(
        _cbam_kernel,
        out_shape=jax.ShapeDtypeStruct((nB, nC, nS), jnp.float32),
        in_specs=[vmem,      # img  (B, C, S) f32
                  vmem,      # chan (B, C, 1) f32
                  vmem,      # M_max  (S, S) bf16
                  vmem,      # M_mean (S, S) bf16
                  smem],     # conv bias scalar
        out_specs=vmem,
    )(img2, chan3, m_max, m_mean, cb)
    return out.reshape(nB, nC, d, h, w)


# -------------------------------- reference ---------------------------------
def reference(img, table, p):
    hdn = jnp.maximum(table @ p["w1"] + p["b1"], 0.0)
    chan = jax.nn.sigmoid(hdn @ p["w2"] + p["b2"])           # (B, C)
    x = img * chan[:, :, None, None, None]
    mx = jnp.max(x, axis=1, keepdims=True)
    mn = jnp.mean(x, axis=1, keepdims=True)
    pooled = jnp.concatenate([mx, mn], axis=1)               # (B, 2, D, H, W)
    conv = lax.conv_general_dilated(
        pooled, p["wconv"], window_strides=(1, 1, 1),
        padding=[(P, P)] * 3,
        dimension_numbers=("NCDHW", "OIDHW", "NCDHW"),
        precision=lax.Precision.HIGHEST)
    sp = jax.nn.sigmoid(conv + p["bconv"])                   # (B, 1, D, H, W)
    return x * sp


# ----------------------------------- main ------------------------------------
if __name__ == "__main__":
    key = jax.random.PRNGKey(0)
    ks = jax.random.split(key, 8)

    def nrm(k, shape, scale):
        return (scale * jax.random.normal(k, shape)).astype(jnp.float32)

    params = {
        "w1": nrm(ks[0], (TD, HID), 0.5),
        "b1": nrm(ks[1], (HID,), 0.1),
        "w2": nrm(ks[2], (HID, C), 0.5),
        "b2": nrm(ks[3], (C,), 0.1),
        "wconv": nrm(ks[4], (1, 2, K, K, K), 0.05),
        "bconv": jnp.float32(0.03),
    }
    img = nrm(ks[5], (B, C, DD, HH, WW), 1.0)
    table = nrm(ks[6], (B, TD), 1.0)

    # Fold the Conv3d weights into dense (S, S) operators (host-side, once),
    # and ship them in bf16 (the dominant HBM transfer).
    m_max_np, m_mean_np = conv3d_to_dense(params["wconv"], DD, HH, WW)
    m_max = jnp.asarray(m_max_np, dtype=jnp.bfloat16)
    m_mean = jnp.asarray(m_mean_np, dtype=jnp.bfloat16)

    out = cross_modal_cbam(img, table, params["w1"], params["b1"],
                           params["w2"], params["b2"], m_max, m_mean,
                           params["bconv"])
    jax.block_until_ready(out)

    with jax.default_matmul_precision("highest"):
        ref = jax.jit(reference)(img, table, params)
    np.testing.assert_allclose(np.asarray(out), np.asarray(ref),
                               rtol=1e-2, atol=2e-2)

    print("KERNEL_OK")
</pallas_src>

<mosaic_0001>
module attributes {stable_mosaic.version = 11 : i64} {
  func.func @_cbam_kernel(%arg0: memref<2x32x512xf32, #tpu.memory_space<vmem>>, %arg1: memref<2x32x1xf32, #tpu.memory_space<vmem>>, %arg2: memref<512x512xbf16, #tpu.memory_space<vmem>>, %arg3: memref<512x512xbf16, #tpu.memory_space<vmem>>, %arg4: memref<1xf32, #tpu.memory_space<smem>>, %arg5: memref<2x32x512xf32, #tpu.memory_space<vmem>>) attributes {dimension_semantics = [], scalar_prefetch = 0 : i64, scratch_operands = 0 : i64, tpu.core_type = #tpu.core_type<tc>} {
    %cst = arith.constant 0xFF800000 : f32
    %0 = vector.broadcast %cst : f32 to vector<2x512xf32>
    %cst_0 = arith.constant 0.000000e+00 : f32
    %1 = vector.broadcast %cst_0 : f32 to vector<2x512xf32>
    %c0 = arith.constant 0 : index
    %c0_1 = arith.constant 0 : index
    %c0_2 = arith.constant 0 : index
    %2 = vector.load %arg0[%c0, %c0_1, %c0_2] : memref<2x32x512xf32, #tpu.memory_space<vmem>>, vector<2x8x512xf32>
    %c0_3 = arith.constant 0 : index
    %c0_4 = arith.constant 0 : index
    %c0_5 = arith.constant 0 : index
    %3 = vector.load %arg1[%c0_3, %c0_4, %c0_5] : memref<2x32x1xf32, #tpu.memory_space<vmem>>, vector<2x8x1xf32>
    %4 = vector.broadcast %3 : vector<2x8x1xf32> to vector<2x8x512xf32>
    %5 = arith.mulf %2, %4 : vector<2x8x512xf32>
    %c0_6 = arith.constant 0 : index
    %c0_7 = arith.constant 0 : index
    %c0_8 = arith.constant 0 : index
    %6 = vector.load %arg5[%c0_6, %c0_7, %c0_8] : memref<2x32x512xf32, #tpu.memory_space<vmem>>, vector<2x8x512xf32>
    tpu.vector_store %arg5[%c0_6, %c0_7, %c0_8], %5 {strides = array<i32>} : memref<2x32x512xf32, #tpu.memory_space<vmem>>, vector<2x8x512xf32>,
    %cst_9 = arith.constant dense<0xFF800000> : vector<2x512xf32>
    %7 = vector.multi_reduction <maximumf>, %5, %cst_9 [1] : vector<2x8x512xf32> to vector<2x512xf32>
    %8 = arith.maximumf %0, %7 : vector<2x512xf32>
    %cst_10 = arith.constant dense<0.000000e+00> : vector<2x512xf32>
    %9 = vector.multi_reduction <add>, %5, %cst_10 [1] : vector<2x8x512xf32> to vector<2x512xf32>
    %10 = arith.addf %1, %9 : vector<2x512xf32>
    %c0_11 = arith.constant 0 : index
    %c8 = arith.constant 8 : index
    %c0_12 = arith.constant 0 : index
    %11 = vector.load %arg0[%c0_11, %c8, %c0_12] : memref<2x32x512xf32, #tpu.memory_space<vmem>>, vector<2x8x512xf32>
    %c0_13 = arith.constant 0 : index
    %c8_14 = arith.constant 8 : index
    %c0_15 = arith.constant 0 : index
    %12 = vector.load %arg1[%c0_13, %c8_14, %c0_15] : memref<2x32x1xf32, #tpu.memory_space<vmem>>, vector<2x8x1xf32>
    %13 = vector.broadcast %12 : vector<2x8x1xf32> to vector<2x8x512xf32>
    %14 = arith.mulf %11, %13 : vector<2x8x512xf32>
    %c0_16 = arith.constant 0 : index
    %c8_17 = arith.constant 8 : index
    %c0_18 = arith.constant 0 : index
    %15 = vector.load %arg5[%c0_16, %c8_17, %c0_18] : memref<2x32x512xf32, #tpu.memory_space<vmem>>, vector<2x8x512xf32>
    tpu.vector_store %arg5[%c0_16, %c8_17, %c0_18], %14 {strides = array<i32>} : memref<2x32x512xf32, #tpu.memory_space<vmem>>, vector<2x8x512xf32>,
    %cst_19 = arith.constant dense<0xFF800000> : vector<2x512xf32>
    %16 = vector.multi_reduction <maximumf>, %14, %cst_19 [1] : vector<2x8x512xf32> to vector<2x512xf32>
    %17 = arith.maximumf %8, %16 : vector<2x512xf32>
    %cst_20 = arith.constant dense<0.000000e+00> : vector<2x512xf32>
    %18 = vector.multi_reduction <add>, %14, %cst_20 [1] : vector<2x8x512xf32> to vector<2x512xf32>
    %19 = arith.addf %10, %18 : vector<2x512xf32>
    %c0_21 = arith.constant 0 : index
    %c16 = arith.constant 16 : index
    %c0_22 = arith.constant 0 : index
    %20 = vector.load %arg0[%c0_21, %c16, %c0_22] : memref<2x32x512xf32, #tpu.memory_space<vmem>>, vector<2x8x512xf32>
    %c0_23 = arith.constant 0 : index
    %c16_24 = arith.constant 16 : index
    %c0_25 = arith.constant 0 : index
    %21 = vector.load %arg1[%c0_23, %c16_24, %c0_25] : memref<2x32x1xf32, #tpu.memory_space<vmem>>, vector<2x8x1xf32>
    %22 = vector.broadcast %21 : vector<2x8x1xf32> to vector<2x8x512xf32>
    %23 = arith.mulf %20, %22 : vector<2x8x512xf32>
    %c0_26 = arith.constant 0 : index
    %c16_27 = arith.constant 16 : index
    %c0_28 = arith.constant 0 : index
    %24 = vector.load %arg5[%c0_26, %c16_27, %c0_28] : memref<2x32x512xf32, #tpu.memory_space<vmem>>, vector<2x8x512xf32>
    tpu.vector_store %arg5[%c0_26, %c16_27, %c0_28], %23 {strides = array<i32>} : memref<2x32x512xf32, #tpu.memory_space<vmem>>, vector<2x8x512xf32>,
    %cst_29 = arith.constant dense<0xFF800000> : vector<2x512xf32>
    %25 = vector.multi_reduction <maximumf>, %23, %cst_29 [1] : vector<2x8x512xf32> to vector<2x512xf32>
    %26 = arith.maximumf %17, %25 : vector<2x512xf32>
    %cst_30 = arith.constant dense<0.000000e+00> : vector<2x512xf32>
    %27 = vector.multi_reduction <add>, %23, %cst_30 [1] : vector<2x8x512xf32> to vector<2x512xf32>
    %28 = arith.addf %19, %27 : vector<2x512xf32>
    %c0_31 = arith.constant 0 : index
    %c24 = arith.constant 24 : index
    %c0_32 = arith.constant 0 : index
    %29 = vector.load %arg0[%c0_31, %c24, %c0_32] : memref<2x32x512xf32, #tpu.memory_space<vmem>>, vector<2x8x512xf32>
    %c0_33 = arith.constant 0 : index
    %c24_34 = arith.constant 24 : index
    %c0_35 = arith.constant 0 : index
    %30 = vector.load %arg1[%c0_33, %c24_34, %c0_35] : memref<2x32x1xf32, #tpu.memory_space<vmem>>, vector<2x8x1xf32>
    %31 = vector.broadcast %30 : vector<2x8x1xf32> to vector<2x8x512xf32>
    %32 = arith.mulf %29, %31 : vector<2x8x512xf32>
    %c0_36 = arith.constant 0 : index
    %c24_37 = arith.constant 24 : index
    %c0_38 = arith.constant 0 : index
    %33 = vector.load %arg5[%c0_36, %c24_37, %c0_38] : memref<2x32x512xf32, #tpu.memory_space<vmem>>, vector<2x8x512xf32>
    tpu.vector_store %arg5[%c0_36, %c24_37, %c0_38], %32 {strides = array<i32>} : memref<2x32x512xf32, #tpu.memory_space<vmem>>, vector<2x8x512xf32>,
    %cst_39 = arith.constant dense<0xFF800000> : vector<2x512xf32>
    %34 = vector.multi_reduction <maximumf>, %32, %cst_39 [1] : vector<2x8x512xf32> to vector<2x512xf32>
    %35 = arith.maximumf %26, %34 : vector<2x512xf32>
    %cst_40 = arith.constant dense<0.000000e+00> : vector<2x512xf32>
    %36 = vector.multi_reduction <add>, %32, %cst_40 [1] : vector<2x8x512xf32> to vector<2x512xf32>
    %37 = arith.addf %28, %36 : vector<2x512xf32>
    %cst_41 = arith.constant 3.125000e-02 : f32
    %38 = vector.broadcast %cst_41 : f32 to vector<2x512xf32>
    %39 = arith.mulf %37, %38 : vector<2x512xf32>
    %40 = arith.truncf %35 : vector<2x512xf32> to vector<2x512xbf16>
    %c0_42 = arith.constant 0 : index
    %c0_43 = arith.constant 0 : index
    %41 = vector.load %arg2[%c0_42, %c0_43] : memref<512x512xbf16, #tpu.memory_space<vmem>>, vector<512x512xbf16>
    %cst_44 = arith.constant dense<0.000000e+00> : vector<2x512xf32>
    %42 = tpu.matmul %40, %41, %cst_44 {dimension_numbers = #tpu.dot_dimension_numbers<[1], [0], [0], [1], [0, 0, 1, 1], [], []>} : vector<2x512xbf16>, vector<512x512xbf16>, vector<2x512xf32> -> vector<2x512xf32>
    %43 = arith.truncf %39 : vector<2x512xf32> to vector<2x512xbf16>
    %c0_45 = arith.constant 0 : index
    %c0_46 = arith.constant 0 : index
    %44 = vector.load %arg3[%c0_45, %c0_46] : memref<512x512xbf16, #tpu.memory_space<vmem>>, vector<512x512xbf16>
    %cst_47 = arith.constant dense<0.000000e+00> : vector<2x512xf32>
    %45 = tpu.matmul %43, %44, %cst_47 {dimension_numbers = #tpu.dot_dimension_numbers<[1], [0], [0], [1], [0, 0, 1, 1], [], []>} : vector<2x512xbf16>, vector<512x512xbf16>, vector<2x512xf32> -> vector<2x512xf32>
    %46 = arith.addf %42, %45 : vector<2x512xf32>
    %c0_48 = arith.constant 0 : index
    %47 = memref.load %arg4[%c0_48] : memref<1xf32, #tpu.memory_space<smem>>
    %48 = vector.broadcast %47 : f32 to vector<2x512xf32>
    %49 = arith.addf %46, %48 : vector<2x512xf32>
    %cst_49 = arith.constant 0.000000e+00 : f32
    %50 = vector.broadcast %cst_49 : f32 to vector<2x512xf32>
    %51 = arith.subf %50, %49 : vector<2x512xf32>
    %52 = math.exp %51 : vector<2x512xf32>
    %cst_50 = arith.constant 1.000000e+00 : f32
    %53 = vector.broadcast %cst_50 : f32 to vector<2x512xf32>
    %54 = arith.addf %53, %52 : vector<2x512xf32>
    %cst_51 = arith.constant 1.000000e+00 : f32
    %55 = vector.broadcast %cst_51 : f32 to vector<2x512xf32>
    %56 = arith.divf %55, %54 : vector<2x512xf32>
    %c0_52 = arith.constant 0 : index
    %c0_53 = arith.constant 0 : index
    %c0_54 = arith.constant 0 : index
    %57 = vector.load %arg5[%c0_52, %c0_53, %c0_54] : memref<2x32x512xf32, #tpu.memory_space<vmem>>, vector<2x8x512xf32>
    %58 = vector.shape_cast %56 : vector<2x512xf32> to vector<2x1x512xf32>
    %59 = vector.broadcast %58 : vector<2x1x512xf32> to vector<2x8x512xf32>
    %60 = arith.mulf %57, %59 : vector<2x8x512xf32>
    %c0_55 = arith.constant 0 : index
    %c0_56 = arith.constant 0 : index
    %c0_57 = arith.constant 0 : index
    %61 = vector.load %arg5[%c0_55, %c0_56, %c0_57] : memref<2x32x512xf32, #tpu.memory_space<vmem>>, vector<2x8x512xf32>
    tpu.vector_store %arg5[%c0_55, %c0_56, %c0_57], %60 {strides = array<i32>} : memref<2x32x512xf32, #tpu.memory_space<vmem>>, vector<2x8x512xf32>,
    %c0_58 = arith.constant 0 : index
    %c8_59 = arith.constant 8 : index
    %c0_60 = arith.constant 0 : index
    %62 = vector.load %arg5[%c0_58, %c8_59, %c0_60] : memref<2x32x512xf32, #tpu.memory_space<vmem>>, vector<2x8x512xf32>
    %63 = vector.shape_cast %56 : vector<2x512xf32> to vector<2x1x512xf32>
    %64 = vector.broadcast %63 : vector<2x1x512xf32> to vector<2x8x512xf32>
    %65 = arith.mulf %62, %64 : vector<2x8x512xf32>
    %c0_61 = arith.constant 0 : index
    %c8_62 = arith.constant 8 : index
    %c0_63 = arith.constant 0 : index
    %66 = vector.load %arg5[%c0_61, %c8_62, %c0_63] : memref<2x32x512xf32, #tpu.memory_space<vmem>>, vector<2x8x512xf32>
    tpu.vector_store %arg5[%c0_61, %c8_62, %c0_63], %65 {strides = array<i32>} : memref<2x32x512xf32, #tpu.memory_space<vmem>>, vector<2x8x512xf32>,
    %c0_64 = arith.constant 0 : index
    %c16_65 = arith.constant 16 : index
    %c0_66 = arith.constant 0 : index
    %67 = vector.load %arg5[%c0_64, %c16_65, %c0_66] : memref<2x32x512xf32, #tpu.memory_space<vmem>>, vector<2x8x512xf32>
    %68 = vector.shape_cast %56 : vector<2x512xf32> to vector<2x1x512xf32>
    %69 = vector.broadcast %68 : vector<2x1x512xf32> to vector<2x8x512xf32>
    %70 = arith.mulf %67, %69 : vector<2x8x512xf32>
    %c0_67 = arith.constant 0 : index
    %c16_68 = arith.constant 16 : index
    %c0_69 = arith.constant 0 : index
    %71 = vector.load %arg5[%c0_67, %c16_68, %c0_69] : memref<2x32x512xf32, #tpu.memory_space<vmem>>, vector<2x8x512xf32>
    tpu.vector_store %arg5[%c0_67, %c16_68, %c0_69], %70 {strides = array<i32>} : memref<2x32x512xf32, #tpu.memory_space<vmem>>, vector<2x8x512xf32>,
    %c0_70 = arith.constant 0 : index
    %c24_71 = arith.constant 24 : index
    %c0_72 = arith.constant 0 : index
    %72 = vector.load %arg5[%c0_70, %c24_71, %c0_72] : memref<2x32x512xf32, #tpu.memory_space<vmem>>, vector<2x8x512xf32>
    %73 = vector.shape_cast %56 : vector<2x512xf32> to vector<2x1x512xf32>
    %74 = vector.broadcast %73 : vector<2x1x512xf32> to vector<2x8x512xf32>
    %75 = arith.mulf %72, %74 : vector<2x8x512xf32>
    %c0_73 = arith.constant 0 : index
    %c24_74 = arith.constant 24 : index
    %c0_75 = arith.constant 0 : index
    %76 = vector.load %arg5[%c0_73, %c24_74, %c0_75] : memref<2x32x512xf32, #tpu.memory_space<vmem>>, vector<2x8x512xf32>
    tpu.vector_store %arg5[%c0_73, %c24_74, %c0_75], %75 {strides = array<i32>} : memref<2x32x512xf32, #tpu.memory_space<vmem>>, vector<2x8x512xf32>,
    return
  }
}

</mosaic_0001>

<llo_original>
// kernel: cross_modal_cbam.1
$region0: #{cross_modal_cbam.1}
  #allocation0 [shape = 'u32[]', space=smem, size = 0x4, offset = 0x4, fixed_abs, tag = 'smem constant byte address 0x4 - core index']
  #allocation1 [shape = 'u32[144,128]{1,0:T(1,128)}', space=vmem, size = 0x12000, scoped, tag = 'internal scratch']
  #allocation2 [shape = 'f32[1]{0:T(128)S(6)}', space=smem, size = 0x200, scoped, tag = 'scoped memory for cross_modal_cbam.1']
  %s0 = inlined_call_operand.vmem [shape: f32[2,32,512], index: 0, kind: input, shape index: {}]
  %s1 = inlined_call_operand.vmem [shape: f32[2,32,1], index: 1, kind: input, shape index: {}]
  %s2 = inlined_call_operand.vmem [shape: bf16[512,512], index: 2, kind: input, shape index: {}]
  %s3 = inlined_call_operand.hbm [shape: bf16[512,512], index: 3, kind: input, shape index: {}]
  %s4 = inlined_call_operand.<no memory space> [shape: f32[1], index: 4, kind: input, shape index: {}]
  %s5 = inlined_call_operand.vmem [shape: f32[2,32,512], index: 5, kind: output, shape index: {}]
  %s6 = sld [smem:[#allocation0]]
  $region34: #{cross_modal_cbam.1} parent=0
    _
  %s8 = ssub.s32 1, %s6
  %s9 = scalar_select 0, %s8, %s6
  %10 = sst [smem:[#allocation2]] %s4
  $region1: #{cross_modal_cbam.1} parent=0
    #allocation3 [shape = 'u8[524288]{0}', space=vmem, size = 0x80000, scoped, tag = 'input window, operand 3, single buffered']
    #allocation4 [shape = 's32[1]{0}', space=sflag, size = 0x4, scoped, tag = 'scoped memory for cross_modal_cbam.1']
    %11 = vsyncpa [#allocation4], 0
    // Predicated region
    $region2: #{cross_modal_cbam.1} parent=1 // pred_check
      _
    $region3: #{cross_modal_cbam.1} parent=1 // pred_check_branch
      %13 = sbr.rel (0) target = $region5
    $region4: #{cross_modal_cbam.1} parent=1 // pred_region
      _
    $region5: #{cross_modal_cbam.1} parent=1 // pred_fallthru
      _
    // Predicated region
    $region6: #{cross_modal_cbam.1} parent=1 // pred_check
      _
    $region7: #{cross_modal_cbam.1} parent=1 // pred_check_branch
      %15 = sbr.rel (0) target = $region9
    $region8: #{cross_modal_cbam.1} parent=1 // pred_region
      _
    $region9: #{cross_modal_cbam.1} parent=1 // pred_fallthru
      _
    // Predicated region
    $region10: #{cross_modal_cbam.1} parent=1 // pred_check
      _
    $region11: #{cross_modal_cbam.1} parent=1 // pred_check_branch
      %17 = sbr.rel (0) target = $region13
    $region12: #{cross_modal_cbam.1} parent=1 // pred_region
      _
    $region13: #{cross_modal_cbam.1} parent=1 // pred_fallthru
      _
    // Predicated region
    $region14: #{cross_modal_cbam.1} parent=1 // pred_check
      _
    $region15: #{cross_modal_cbam.1} parent=1 // pred_check_branch
      %19 = sbr.rel (0) target = $region17
    $region16: #{cross_modal_cbam.1} parent=1 // pred_region
      %s21 = ssub.s32 16384, 16384
      %22 = vsyncadd [#allocation4], %s21
      %s23 = sshll.u32 [#allocation3], 4
      %s24 = int_to_ptr.vmem [resolvable:$true] %s23
      %29 = dma.hbm_to_vmem [thread:$0]  %s3, 16384, %s24, [#allocation4], 256, 256, 16
    $region17: #{cross_modal_cbam.1} parent=1 // pred_fallthru
      _
    // Predicated region
    $region18: #{cross_modal_cbam.1} parent=1 // pred_check
      _
    $region19: #{cross_modal_cbam.1} parent=1 // pred_check_branch
      %31 = sbr.rel (0) target = $region21
    $region20: #{cross_modal_cbam.1} parent=1 // pred_region
      _
    $region21: #{cross_modal_cbam.1} parent=1 // pred_fallthru
      _
    // Predicated region
    $region22: #{cross_modal_cbam.1} parent=1 // pred_check
      _
    $region23: #{cross_modal_cbam.1} parent=1 // pred_check_branch
      %33 = sbr.rel (0) target = $region25
    $region24: #{cross_modal_cbam.1} parent=1 // pred_region
      %34 = dma.done [#allocation4], 16384
    $region25: #{cross_modal_cbam.1} parent=1 // pred_fallthru
      _
    %v35 = vld [vmem:[%s0] sm:$0xff]
    %v36 = vld [vmem:[%s0 + $0x8] sm:$0xff]
    %v37 = vld [vmem:[%s0 + $0x10] sm:$0xff]
    %v38 = vld [vmem:[%s0 + $0x18] sm:$0xff]
    %v39 = vld [vmem:[%s0 + $0x80] sm:$0xff]
    %v40 = vld [vmem:[%s0 + $0x88] sm:$0xff]
    %v41 = vld [vmem:[%s0 + $0x90] sm:$0xff]
    %v42 = vld [vmem:[%s0 + $0x98] sm:$0xff]
    %v43 = vld [vmem:[%s1] sm:$0xff]
    %v44 = vld [vmem:[%s1 + $0x20] sm:$0xff]
    %46 = vset.pattern.permute.xlu0 0
    %47 = vperm.xlu0 %46, %v43
    %v48 = vpop.permute.xlu0 %47
    %51 = vset.pattern.permute.xlu0 0
    %52 = vperm.xlu0 %51, %v44
    %v53 = vpop.permute.xlu0 %52
    %v55 = vmul.f32 %v35, %v48
    %v56 = vmul.f32 %v36, %v48
    %v57 = vmul.f32 %v37, %v48
    %v58 = vmul.f32 %v38, %v48
    %v59 = vmul.f32 %v39, %v53
    %v60 = vmul.f32 %v40, %v53
    %v61 = vmul.f32 %v41, %v53
    %v62 = vmul.f32 %v42, %v53
    %63 = vst [vmem:[%s5] sm:$0xff] %v55
    %64 = vst [vmem:[%s5 + $0x8] sm:$0xff] %v56
    %65 = vst [vmem:[%s5 + $0x10] sm:$0xff] %v57
    %66 = vst [vmem:[%s5 + $0x18] sm:$0xff] %v58
    %67 = vst [vmem:[%s5 + $0x80] sm:$0xff] %v59
    %68 = vst [vmem:[%s5 + $0x88] sm:$0xff] %v60
    %69 = vst [vmem:[%s5 + $0x90] sm:$0xff] %v61
    %70 = vst [vmem:[%s5 + $0x98] sm:$0xff] %v62
    %v71 = vrot.slane %v55, 4
    %v72 = vmax.f32 %v55, %v71
    %v73 = vrot.slane %v72, 2
    %v74 = vmax.f32 %v72, %v73
    %v75 = vrot.slane %v74, 1
    %v76 = vmax.f32 %v74, %v75
    %v77 = vrot.slane %v56, 4
    %v78 = vmax.f32 %v56, %v77
    %v79 = vrot.slane %v78, 2
    %v80 = vmax.f32 %v78, %v79
    %v81 = vrot.slane %v80, 1
    %v82 = vmax.f32 %v80, %v81
    %v83 = vrot.slane %v57, 4
    %v84 = vmax.f32 %v57, %v83
    %v85 = vrot.slane %v84, 2
    %v86 = vmax.f32 %v84, %v85
    %v87 = vrot.slane %v86, 1
    %v88 = vmax.f32 %v86, %v87
    %v89 = vrot.slane %v58, 4
    %v90 = vmax.f32 %v58, %v89
    %v91 = vrot.slane %v90, 2
    %v92 = vmax.f32 %v90, %v91
    %v93 = vrot.slane %v92, 1
    %v94 = vmax.f32 %v92, %v93
    %v95 = vrot.slane %v59, 4
    %v96 = vmax.f32 %v59, %v95
    %v97 = vrot.slane %v96, 2
    %v98 = vmax.f32 %v96, %v97
    %v99 = vrot.slane %v98, 1
    %v100 = vmax.f32 %v98, %v99
    %v101 = vrot.slane %v60, 4
    %v102 = vmax.f32 %v60, %v101
    %v103 = vrot.slane %v102, 2
    %v104 = vmax.f32 %v102, %v103
    %v105 = vrot.slane %v104, 1
    %v106 = vmax.f32 %v104, %v105
    %v107 = vrot.slane %v61, 4
    %v108 = vmax.f32 %v61, %v107
    %v109 = vrot.slane %v108, 2
    %v110 = vmax.f32 %v108, %v109
    %v111 = vrot.slane %v110, 1
    %v112 = vmax.f32 %v110, %v111
    %v113 = vrot.slane %v62, 4
    %v114 = vmax.f32 %v62, %v113
    %v115 = vrot.slane %v114, 2
    %v116 = vmax.f32 %v114, %v115
    %v117 = vrot.slane %v116, 1
    %v118 = vmax.f32 %v116, %v117
    %v119 = vrot.slane %v55, 4
    %v120 = vadd.f32 %v55, %v119
    %v121 = vrot.slane %v120, 2
    %v122 = vadd.f32 %v120, %v121
    %v123 = vrot.slane %v122, 1
    %v124 = vadd.f32 %v122, %v123
    %v125 = vrot.slane %v56, 4
    %v126 = vadd.f32 %v56, %v125
    %v127 = vrot.slane %v126, 2
    %v128 = vadd.f32 %v126, %v127
    %v129 = vrot.slane %v128, 1
    %v130 = vadd.f32 %v128, %v129
    %v131 = vrot.slane %v57, 4
    %v132 = vadd.f32 %v57, %v131
    %v133 = vrot.slane %v132, 2
    %v134 = vadd.f32 %v132, %v133
    %v135 = vrot.slane %v134, 1
    %v136 = vadd.f32 %v134, %v135
    %v137 = vrot.slane %v58, 4
    %v138 = vadd.f32 %v58, %v137
    %v139 = vrot.slane %v138, 2
    %v140 = vadd.f32 %v138, %v139
    %v141 = vrot.slane %v140, 1
    %v142 = vadd.f32 %v140, %v141
    %v143 = vrot.slane %v59, 4
    %v144 = vadd.f32 %v59, %v143
    %v145 = vrot.slane %v144, 2
    %v146 = vadd.f32 %v144, %v145
    %v147 = vrot.slane %v146, 1
    %v148 = vadd.f32 %v146, %v147
    %v149 = vrot.slane %v60, 4
    %v150 = vadd.f32 %v60, %v149
    %v151 = vrot.slane %v150, 2
    %v152 = vadd.f32 %v150, %v151
    %v153 = vrot.slane %v152, 1
    %v154 = vadd.f32 %v152, %v153
    %v155 = vrot.slane %v61, 4
    %v156 = vadd.f32 %v61, %v155
    %v157 = vrot.slane %v156, 2
    %v158 = vadd.f32 %v156, %v157
    %v159 = vrot.slane %v158, 1
    %v160 = vadd.f32 %v158, %v159
    %v161 = vrot.slane %v62, 4
    %v162 = vadd.f32 %v62, %v161
    %v163 = vrot.slane %v162, 2
    %v164 = vadd.f32 %v162, %v163
    %v165 = vrot.slane %v164, 1
    %v166 = vadd.f32 %v164, %v165
    %v167 = vadd.f32 %v124, 0.0
    %v168 = vadd.f32 %v130, 0.0
    %v169 = vadd.f32 %v136, 0.0
    %v170 = vadd.f32 %v142, 0.0
    %v171 = vadd.f32 %v148, 0.0
    %v172 = vadd.f32 %v154, 0.0
    %v173 = vadd.f32 %v160, 0.0
    %v174 = vadd.f32 %v166, 0.0
    %v175 = vld [vmem:[%s0 + $0x20] sm:$0xff]
    %v176 = vld [vmem:[%s0 + $0x28] sm:$0xff]
    %v177 = vld [vmem:[%s0 + $0x30] sm:$0xff]
    %v178 = vld [vmem:[%s0 + $0x38] sm:$0xff]
    %v179 = vld [vmem:[%s0 + $0xa0] sm:$0xff]
    %v180 = vld [vmem:[%s0 + $0xa8] sm:$0xff]
    %v181 = vld [vmem:[%s0 + $0xb0] sm:$0xff]
    %v182 = vld [vmem:[%s0 + $0xb8] sm:$0xff]
    %v183 = vld [vmem:[%s1 + $0x8] sm:$0xff]
    %v184 = vld [vmem:[%s1 + $0x28] sm:$0xff]
    %186 = vset.pattern.permute.xlu0 0
    %187 = vperm.xlu0 %186, %v183
    %v188 = vpop.permute.xlu0 %187
    %191 = vset.pattern.permute.xlu0 0
    %192 = vperm.xlu0 %191, %v184
    %v193 = vpop.permute.xlu0 %192
    %v195 = vmul.f32 %v175, %v188
    %v196 = vmul.f32 %v176, %v188
    %v197 = vmul.f32 %v177, %v188
    %v198 = vmul.f32 %v178, %v188
    %v199 = vmul.f32 %v179, %v193
    %v200 = vmul.f32 %v180, %v193
    %v201 = vmul.f32 %v181, %v193
    %v202 = vmul.f32 %v182, %v193
    %203 = vst [vmem:[%s5 + $0x20] sm:$0xff] %v195
    %204 = vst [vmem:[%s5 + $0x28] sm:$0xff] %v196
    %205 = vst [vmem:[%s5 + $0x30] sm:$0xff] %v197
    %206 = vst [vmem:[%s5 + $0x38] sm:$0xff] %v198
    %207 = vst [vmem:[%s5 + $0xa0] sm:$0xff] %v199
    %208 = vst [vmem:[%s5 + $0xa8] sm:$0xff] %v200
    %209 = vst [vmem:[%s5 + $0xb0] sm:$0xff] %v201
    %210 = vst [vmem:[%s5 + $0xb8] sm:$0xff] %v202
    %v211 = vrot.slane %v195, 4
    %v212 = vmax.f32 %v195, %v211
    %v213 = vrot.slane %v212, 2
    %v214 = vmax.f32 %v212, %v213
    %v215 = vrot.slane %v214, 1
    %v216 = vmax.f32 %v214, %v215
    %v217 = vrot.slane %v196, 4
    %v218 = vmax.f32 %v196, %v217
    %v219 = vrot.slane %v218, 2
    %v220 = vmax.f32 %v218, %v219
    %v221 = vrot.slane %v220, 1
    %v222 = vmax.f32 %v220, %v221
    %v223 = vrot.slane %v197, 4
    %v224 = vmax.f32 %v197, %v223
    %v225 = vrot.slane %v224, 2
    %v226 = vmax.f32 %v224, %v225
    %v227 = vrot.slane %v226, 1
    %v228 = vmax.f32 %v226, %v227
    %v229 = vrot.slane %v198, 4
    %v230 = vmax.f32 %v198, %v229
    %v231 = vrot.slane %v230, 2
    %v232 = vmax.f32 %v230, %v231
    %v233 = vrot.slane %v232, 1
    %v234 = vmax.f32 %v232, %v233
    %v235 = vrot.slane %v199, 4
    %v236 = vmax.f32 %v199, %v235
    %v237 = vrot.slane %v236, 2
    %v238 = vmax.f32 %v236, %v237
    %v239 = vrot.slane %v238, 1
    %v240 = vmax.f32 %v238, %v239
    %v241 = vrot.slane %v200, 4
    %v242 = vmax.f32 %v200, %v241
    %v243 = vrot.slane %v242, 2
    %v244 = vmax.f32 %v242, %v243
    %v245 = vrot.slane %v244, 1
    %v246 = vmax.f32 %v244, %v245
    %v247 = vrot.slane %v201, 4
    %v248 = vmax.f32 %v201, %v247
    %v249 = vrot.slane %v248, 2
    %v250 = vmax.f32 %v248, %v249
    %v251 = vrot.slane %v250, 1
    %v252 = vmax.f32 %v250, %v251
    %v253 = vrot.slane %v202, 4
    %v254 = vmax.f32 %v202, %v253
    %v255 = vrot.slane %v254, 2
    %v256 = vmax.f32 %v254, %v255
    %v257 = vrot.slane %v256, 1
    %v258 = vmax.f32 %v256, %v257
    %v259 = vmax.f32 %v76, %v216
    %v260 = vmax.f32 %v82, %v222
    %v261 = vmax.f32 %v88, %v228
    %v262 = vmax.f32 %v94, %v234
    %v263 = vmax.f32 %v100, %v240
    %v264 = vmax.f32 %v106, %v246
    %v265 = vmax.f32 %v112, %v252
    %v266 = vmax.f32 %v118, %v258
    %v267 = vrot.slane %v195, 4
    %v268 = vadd.f32 %v195, %v267
    %v269 = vrot.slane %v268, 2
    %v270 = vadd.f32 %v268, %v269
    %v271 = vrot.slane %v270, 1
    %v272 = vadd.f32 %v270, %v271
    %v273 = vrot.slane %v196, 4
    %v274 = vadd.f32 %v196, %v273
    %v275 = vrot.slane %v274, 2
    %v276 = vadd.f32 %v274, %v275
    %v277 = vrot.slane %v276, 1
    %v278 = vadd.f32 %v276, %v277
    %v279 = vrot.slane %v197, 4
    %v280 = vadd.f32 %v197, %v279
    %v281 = vrot.slane %v280, 2
    %v282 = vadd.f32 %v280, %v281
    %v283 = vrot.slane %v282, 1
    %v284 = vadd.f32 %v282, %v283
    %v285 = vrot.slane %v198, 4
    %v286 = vadd.f32 %v198, %v285
    %v287 = vrot.slane %v286, 2
    %v288 = vadd.f32 %v286, %v287
    %v289 = vrot.slane %v288, 1
    %v290 = vadd.f32 %v288, %v289
    %v291 = vrot.slane %v199, 4
    %v292 = vadd.f32 %v199, %v291
    %v293 = vrot.slane %v292, 2
    %v294 = vadd.f32 %v292, %v293
    %v295 = vrot.slane %v294, 1
    %v296 = vadd.f32 %v294, %v295
    %v297 = vrot.slane %v200, 4
    %v298 = vadd.f32 %v200, %v297
    %v299 = vrot.slane %v298, 2
    %v300 = vadd.f32 %v298, %v299
    %v301 = vrot.slane %v300, 1
    %v302 = vadd.f32 %v300, %v301
    %v303 = vrot.slane %v201, 4
    %v304 = vadd.f32 %v201, %v303
    %v305 = vrot.slane %v304, 2
    %v306 = vadd.f32 %v304, %v305
    %v307 = vrot.slane %v306, 1
    %v308 = vadd.f32 %v306, %v307
    %v309 = vrot.slane %v202, 4
    %v310 = vadd.f32 %v202, %v309
    %v311 = vrot.slane %v310, 2
    %v312 = vadd.f32 %v310, %v311
    %v313 = vrot.slane %v312, 1
    %v314 = vadd.f32 %v312, %v313
    %v315 = vadd.f32 %v167, %v272
    %v316 = vadd.f32 %v168, %v278
    %v317 = vadd.f32 %v169, %v284
    %v318 = vadd.f32 %v170, %v290
    %v319 = vadd.f32 %v171, %v296
    %v320 = vadd.f32 %v172, %v302
    %v321 = vadd.f32 %v173, %v308
    %v322 = vadd.f32 %v174, %v314
    %v323 = vld [vmem:[%s0 + $0x40] sm:$0xff]
    %v324 = vld [vmem:[%s0 + $0x48] sm:$0xff]
    %v325 = vld [vmem:[%s0 + $0x50] sm:$0xff]
    %v326 = vld [vmem:[%s0 + $0x58] sm:$0xff]
    %v327 = vld [vmem:[%s0 + $0xc0] sm:$0xff]
    %v328 = vld [vmem:[%s0 + $0xc8] sm:$0xff]
    %v329 = vld [vmem:[%s0 + $0xd0] sm:$0xff]
    %v330 = vld [vmem:[%s0 + $0xd8] sm:$0xff]
    %v331 = vld [vmem:[%s1 + $0x10] sm:$0xff]
    %v332 = vld [vmem:[%s1 + $0x30] sm:$0xff]
    %334 = vset.pattern.permute.xlu0 0
    %335 = vperm.xlu0 %334, %v331
    %v336 = vpop.permute.xlu0 %335
    %339 = vset.pattern.permute.xlu0 0
    %340 = vperm.xlu0 %339, %v332
    %v341 = vpop.permute.xlu0 %340
    %v343 = vmul.f32 %v323, %v336
    %v344 = vmul.f32 %v324, %v336
    %v345 = vmul.f32 %v325, %v336
    %v346 = vmul.f32 %v326, %v336
    %v347 = vmul.f32 %v327, %v341
    %v348 = vmul.f32 %v328, %v341
    %v349 = vmul.f32 %v329, %v341
    %v350 = vmul.f32 %v330, %v341
    %351 = vst [vmem:[%s5 + $0x40] sm:$0xff] %v343
    %352 = vst [vmem:[%s5 + $0x48] sm:$0xff] %v344
    %353 = vst [vmem:[%s5 + $0x50] sm:$0xff] %v345
    %354 = vst [vmem:[%s5 + $0x58] sm:$0xff] %v346
    %355 = vst [vmem:[%s5 + $0xc0] sm:$0xff] %v347
    %356 = vst [vmem:[%s5 + $0xc8] sm:$0xff] %v348
    %357 = vst [vmem:[%s5 + $0xd0] sm:$0xff] %v349
    %358 = vst [vmem:[%s5 + $0xd8] sm:$0xff] %v350
    %v359 = vrot.slane %v343, 4
    %v360 = vmax.f32 %v343, %v359
    %v361 = vrot.slane %v360, 2
    %v362 = vmax.f32 %v360, %v361
    %v363 = vrot.slane %v362, 1
    %v364 = vmax.f32 %v362, %v363
    %v365 = vrot.slane %v344, 4
    %v366 = vmax.f32 %v344, %v365
    %v367 = vrot.slane %v366, 2
    %v368 = vmax.f32 %v366, %v367
    %v369 = vrot.slane %v368, 1
    %v370 = vmax.f32 %v368, %v369
    %v371 = vrot.slane %v345, 4
    %v372 = vmax.f32 %v345, %v371
    %v373 = vrot.slane %v372, 2
    %v374 = vmax.f32 %v372, %v373
    %v375 = vrot.slane %v374, 1
    %v376 = vmax.f32 %v374, %v375
    %v377 = vrot.slane %v346, 4
    %v378 = vmax.f32 %v346, %v377
    %v379 = vrot.slane %v378, 2
    %v380 = vmax.f32 %v378, %v379
    %v381 = vrot.slane %v380, 1
    %v382 = vmax.f32 %v380, %v381
    %v383 = vrot.slane %v347, 4
    %v384 = vmax.f32 %v347, %v383
    %v385 = vrot.slane %v384, 2
    %v386 = vmax.f32 %v384, %v385
    %v387 = vrot.slane %v386, 1
    %v388 = vmax.f32 %v386, %v387
    %v389 = vrot.slane %v348, 4
    %v390 = vmax.f32 %v348, %v389
    %v391 = vrot.slane %v390, 2
    %v392 = vmax.f32 %v390, %v391
    %v393 = vrot.slane %v392, 1
    %v394 = vmax.f32 %v392, %v393
    %v395 = vrot.slane %v349, 4
    %v396 = vmax.f32 %v349, %v395
    %v397 = vrot.slane %v396, 2
    %v398 = vmax.f32 %v396, %v397
    %v399 = vrot.slane %v398, 1
    %v400 = vmax.f32 %v398, %v399
    %v401 = vrot.slane %v350, 4
    %v402 = vmax.f32 %v350, %v401
    %v403 = vrot.slane %v402, 2
    %v404 = vmax.f32 %v402, %v403
    %v405 = vrot.slane %v404, 1
    %v406 = vmax.f32 %v404, %v405
    %v407 = vmax.f32 %v259, %v364
    %v408 = vmax.f32 %v260, %v370
    %v409 = vmax.f32 %v261, %v376
    %v410 = vmax.f32 %v262, %v382
    %v411 = vmax.f32 %v263, %v388
    %v412 = vmax.f32 %v264, %v394
    %v413 = vmax.f32 %v265, %v400
    %v414 = vmax.f32 %v266, %v406
    %v415 = vrot.slane %v343, 4
    %v416 = vadd.f32 %v343, %v415
    %v417 = vrot.slane %v416, 2
    %v418 = vadd.f32 %v416, %v417
    %v419 = vrot.slane %v418, 1
    %v420 = vadd.f32 %v418, %v419
    %v421 = vrot.slane %v344, 4
    %v422 = vadd.f32 %v344, %v421
    %v423 = vrot.slane %v422, 2
    %v424 = vadd.f32 %v422, %v423
    %v425 = vrot.slane %v424, 1
    %v426 = vadd.f32 %v424, %v425
    %v427 = vrot.slane %v345, 4
    %v428 = vadd.f32 %v345, %v427
    %v429 = vrot.slane %v428, 2
    %v430 = vadd.f32 %v428, %v429
    %v431 = vrot.slane %v430, 1
    %v432 = vadd.f32 %v430, %v431
    %v433 = vrot.slane %v346, 4
    %v434 = vadd.f32 %v346, %v433
    %v435 = vrot.slane %v434, 2
    %v436 = vadd.f32 %v434, %v435
    %v437 = vrot.slane %v436, 1
    %v438 = vadd.f32 %v436, %v437
    %v439 = vrot.slane %v347, 4
    %v440 = vadd.f32 %v347, %v439
    %v441 = vrot.slane %v440, 2
    %v442 = vadd.f32 %v440, %v441
    %v443 = vrot.slane %v442, 1
    %v444 = vadd.f32 %v442, %v443
    %v445 = vrot.slane %v348, 4
    %v446 = vadd.f32 %v348, %v445
    %v447 = vrot.slane %v446, 2
    %v448 = vadd.f32 %v446, %v447
    %v449 = vrot.slane %v448, 1
    %v450 = vadd.f32 %v448, %v449
    %v451 = vrot.slane %v349, 4
    %v452 = vadd.f32 %v349, %v451
    %v453 = vrot.slane %v452, 2
    %v454 = vadd.f32 %v452, %v453
    %v455 = vrot.slane %v454, 1
    %v456 = vadd.f32 %v454, %v455
    %v457 = vrot.slane %v350, 4
    %v458 = vadd.f32 %v350, %v457
    %v459 = vrot.slane %v458, 2
    %v460 = vadd.f32 %v458, %v459
    %v461 = vrot.slane %v460, 1
    %v462 = vadd.f32 %v460, %v461
    %v463 = vadd.f32 %v315, %v420
    %v464 = vadd.f32 %v316, %v426
    %v465 = vadd.f32 %v317, %v432
    %v466 = vadd.f32 %v318, %v438
    %v467 = vadd.f32 %v319, %v444
    %v468 = vadd.f32 %v320, %v450
    %v469 = vadd.f32 %v321, %v456
    %v470 = vadd.f32 %v322, %v462
    %v471 = vld [vmem:[%s0 + $0x60] sm:$0xff]
    %v472 = vld [vmem:[%s0 + $0x68] sm:$0xff]
    %v473 = vld [vmem:[%s0 + $0x70] sm:$0xff]
    %v474 = vld [vmem:[%s0 + $0x78] sm:$0xff]
    %v475 = vld [vmem:[%s0 + $0xe0] sm:$0xff]
    %v476 = vld [vmem:[%s0 + $0xe8] sm:$0xff]
    %v477 = vld [vmem:[%s0 + $0xf0] sm:$0xff]
    %v478 = vld [vmem:[%s0 + $0xf8] sm:$0xff]
    %v479 = vld [vmem:[%s1 + $0x18] sm:$0xff]
    %v480 = vld [vmem:[%s1 + $0x38] sm:$0xff]
    %482 = vset.pattern.permute.xlu0 0
    %483 = vperm.xlu0 %482, %v479
    %v484 = vpop.permute.xlu0 %483
    %487 = vset.pattern.permute.xlu0 0
    %488 = vperm.xlu0 %487, %v480
    %v489 = vpop.permute.xlu0 %488
    %v491 = vmul.f32 %v471, %v484
    %v492 = vmul.f32 %v472, %v484
    %v493 = vmul.f32 %v473, %v484
    %v494 = vmul.f32 %v474, %v484
    %v495 = vmul.f32 %v475, %v489
    %v496 = vmul.f32 %v476, %v489
    %v497 = vmul.f32 %v477, %v489
    %v498 = vmul.f32 %v478, %v489
    %499 = vst [vmem:[%s5 + $0x60] sm:$0xff] %v491
    %500 = vst [vmem:[%s5 + $0x68] sm:$0xff] %v492
    %501 = vst [vmem:[%s5 + $0x70] sm:$0xff] %v493
    %502 = vst [vmem:[%s5 + $0x78] sm:$0xff] %v494
    %503 = vst [vmem:[%s5 + $0xe0] sm:$0xff] %v495
    %504 = vst [vmem:[%s5 + $0xe8] sm:$0xff] %v496
    %505 = vst [vmem:[%s5 + $0xf0] sm:$0xff] %v497
    %506 = vst [vmem:[%s5 + $0xf8] sm:$0xff] %v498
    %v507 = vrot.slane %v491, 4
    %v508 = vmax.f32 %v491, %v507
    %v509 = vrot.slane %v508, 2
    %v510 = vmax.f32 %v508, %v509
    %v511 = vrot.slane %v510, 1
    %v512 = vmax.f32 %v510, %v511
    %v513 = vrot.slane %v492, 4
    %v514 = vmax.f32 %v492, %v513
    %v515 = vrot.slane %v514, 2
    %v516 = vmax.f32 %v514, %v515
    %v517 = vrot.slane %v516, 1
    %v518 = vmax.f32 %v516, %v517
    %v519 = vrot.slane %v493, 4
    %v520 = vmax.f32 %v493, %v519
    %v521 = vrot.slane %v520, 2
    %v522 = vmax.f32 %v520, %v521
    %v523 = vrot.slane %v522, 1
    %v524 = vmax.f32 %v522, %v523
    %v525 = vrot.slane %v494, 4
    %v526 = vmax.f32 %v494, %v525
    %v527 = vrot.slane %v526, 2
    %v528 = vmax.f32 %v526, %v527
    %v529 = vrot.slane %v528, 1
    %v530 = vmax.f32 %v528, %v529
    %v531 = vrot.slane %v495, 4
    %v532 = vmax.f32 %v495, %v531
    %v533 = vrot.slane %v532, 2
    %v534 = vmax.f32 %v532, %v533
    %v535 = vrot.slane %v534, 1
    %v536 = vmax.f32 %v534, %v535
    %v537 = vrot.slane %v496, 4
    %v538 = vmax.f32 %v496, %v537
    %v539 = vrot.slane %v538, 2
    %v540 = vmax.f32 %v538, %v539
    %v541 = vrot.slane %v540, 1
    %v542 = vmax.f32 %v540, %v541
    %v543 = vrot.slane %v497, 4
    %v544 = vmax.f32 %v497, %v543
    %v545 = vrot.slane %v544, 2
    %v546 = vmax.f32 %v544, %v545
    %v547 = vrot.slane %v546, 1
    %v548 = vmax.f32 %v546, %v547
    %v549 = vrot.slane %v498, 4
    %v550 = vmax.f32 %v498, %v549
    %v551 = vrot.slane %v550, 2
    %v552 = vmax.f32 %v550, %v551
    %v553 = vrot.slane %v552, 1
    %v554 = vmax.f32 %v552, %v553
    %v555 = vmax.f32 %v407, %v512
    %v556 = vmax.f32 %v408, %v518
    %v557 = vmax.f32 %v409, %v524
    %v558 = vmax.f32 %v410, %v530
    %v559 = vmax.f32 %v411, %v536
    %v560 = vmax.f32 %v412, %v542
    %v561 = vmax.f32 %v413, %v548
    %v562 = vmax.f32 %v414, %v554
    %v563 = vrot.slane %v491, 4
    %v564 = vadd.f32 %v491, %v563
    %v565 = vrot.slane %v564, 2
    %v566 = vadd.f32 %v564, %v565
    %v567 = vrot.slane %v566, 1
    %v568 = vadd.f32 %v566, %v567
    %v569 = vrot.slane %v492, 4
    %v570 = vadd.f32 %v492, %v569
    %v571 = vrot.slane %v570, 2
    %v572 = vadd.f32 %v570, %v571
    %v573 = vrot.slane %v572, 1
    %v574 = vadd.f32 %v572, %v573
    %v575 = vrot.slane %v493, 4
    %v576 = vadd.f32 %v493, %v575
    %v577 = vrot.slane %v576, 2
    %v578 = vadd.f32 %v576, %v577
    %v579 = vrot.slane %v578, 1
    %v580 = vadd.f32 %v578, %v579
    %v581 = vrot.slane %v494, 4
    %v582 = vadd.f32 %v494, %v581
    %v583 = vrot.slane %v582, 2
    %v584 = vadd.f32 %v582, %v583
    %v585 = vrot.slane %v584, 1
    %v586 = vadd.f32 %v584, %v585
    %v587 = vrot.slane %v495, 4
    %v588 = vadd.f32 %v495, %v587
    %v589 = vrot.slane %v588, 2
    %v590 = vadd.f32 %v588, %v589
    %v591 = vrot.slane %v590, 1
    %v592 = vadd.f32 %v590, %v591
    %v593 = vrot.slane %v496, 4
    %v594 = vadd.f32 %v496, %v593
    %v595 = vrot.slane %v594, 2
    %v596 = vadd.f32 %v594, %v595
    %v597 = vrot.slane %v596, 1
    %v598 = vadd.f32 %v596, %v597
    %v599 = vrot.slane %v497, 4
    %v600 = vadd.f32 %v497, %v599
    %v601 = vrot.slane %v600, 2
    %v602 = vadd.f32 %v600, %v601
    %v603 = vrot.slane %v602, 1
    %v604 = vadd.f32 %v602, %v603
    %v605 = vrot.slane %v498, 4
    %v606 = vadd.f32 %v498, %v605
    %v607 = vrot.slane %v606, 2
    %v608 = vadd.f32 %v606, %v607
    %v609 = vrot.slane %v608, 1
    %v610 = vadd.f32 %v608, %v609
    %v611 = vadd.f32 %v463, %v568
    %v612 = vadd.f32 %v464, %v574
    %v613 = vadd.f32 %v465, %v580
    %v614 = vadd.f32 %v466, %v586
    %v615 = vadd.f32 %v467, %v592
    %v616 = vadd.f32 %v468, %v598
    %v617 = vadd.f32 %v469, %v604
    %v618 = vadd.f32 %v470, %v610
    %v619 = vmul.f32 %v611, 0.03125
    %v620 = vmul.f32 %v612, 0.03125
    %v621 = vmul.f32 %v613, 0.03125
    %v622 = vmul.f32 %v614, 0.03125
    %v623 = vmul.f32 %v615, 0.03125
    %v624 = vmul.f32 %v616, 0.03125
    %v625 = vmul.f32 %v617, 0.03125
    %v626 = vmul.f32 %v618, 0.03125
    %v627 = vpack.c.bf16 %v555, %v555
    %v628 = vpack.c.bf16 %v556, %v556
    %v629 = vpack.c.bf16 %v557, %v557
    %v630 = vpack.c.bf16 %v558, %v558
    %v631 = vpack.c.bf16 %v559, %v559
    %v632 = vpack.c.bf16 %v560, %v560
    %v633 = vpack.c.bf16 %v561, %v561
    %v634 = vpack.c.bf16 %v562, %v562
    %v635 = vld [vmem:[%s2] sm:$0xff]
    %v636 = vld [vmem:[%s2 + $0x8] sm:$0xff]
    %v637 = vld [vmem:[%s2 + $0x10] sm:$0xff]
    %v638 = vld [vmem:[%s2 + $0x18] sm:$0xff]
    %v639 = vld [vmem:[%s2 + $0x20] sm:$0xff]
    %v640 = vld [vmem:[%s2 + $0x28] sm:$0xff]
    %v641 = vld [vmem:[%s2 + $0x30] sm:$0xff]
    %v642 = vld [vmem:[%s2 + $0x38] sm:$0xff]
    %v643 = vld [vmem:[%s2 + $0x40] sm:$0xff]
    %v644 = vld [vmem:[%s2 + $0x48] sm:$0xff]
    %v645 = vld [vmem:[%s2 + $0x50] sm:$0xff]
    %v646 = vld [vmem:[%s2 + $0x58] sm:$0xff]
    %v647 = vld [vmem:[%s2 + $0x60] sm:$0xff]
    %v648 = vld [vmem:[%s2 + $0x68] sm:$0xff]
    %v649 = vld [vmem:[%s2 + $0x70] sm:$0xff]
    %v650 = vld [vmem:[%s2 + $0x78] sm:$0xff]
    %v651 = vld [vmem:[%s2 + $0x80] sm:$0xff]
    %v652 = vld [vmem:[%s2 + $0x88] sm:$0xff]
    %v653 = vld [vmem:[%s2 + $0x90] sm:$0xff]
    %v654 = vld [vmem:[%s2 + $0x98] sm:$0xff]
    %v655 = vld [vmem:[%s2 + $0xa0] sm:$0xff]
    %v656 = vld [vmem:[%s2 + $0xa8] sm:$0xff]
    %v657 = vld [vmem:[%s2 + $0xb0] sm:$0xff]
    %v658 = vld [vmem:[%s2 + $0xb8] sm:$0xff]
    %v659 = vld [vmem:[%s2 + $0xc0] sm:$0xff]
    %v660 = vld [vmem:[%s2 + $0xc8] sm:$0xff]
    %v661 = vld [vmem:[%s2 + $0xd0] sm:$0xff]
    %v662 = vld [vmem:[%s2 + $0xd8] sm:$0xff]
    %v663 = vld [vmem:[%s2 + $0xe0] sm:$0xff]
    %v664 = vld [vmem:[%s2 + $0xe8] sm:$0xff]
    %v665 = vld [vmem:[%s2 + $0xf0] sm:$0xff]
    %v666 = vld [vmem:[%s2 + $0xf8] sm:$0xff]
    %v667 = vld [vmem:[%s2 + $0x100] sm:$0xff]
    %v668 = vld [vmem:[%s2 + $0x108] sm:$0xff]
    %v669 = vld [vmem:[%s2 + $0x110] sm:$0xff]
    %v670 = vld [vmem:[%s2 + $0x118] sm:$0xff]
    %v671 = vld [vmem:[%s2 + $0x120] sm:$0xff]
    %v672 = vld [vmem:[%s2 + $0x128] sm:$0xff]
    %v673 = vld [vmem:[%s2 + $0x130] sm:$0xff]
    %v674 = vld [vmem:[%s2 + $0x138] sm:$0xff]
    %v675 = vld [vmem:[%s2 + $0x140] sm:$0xff]
    %v676 = vld [vmem:[%s2 + $0x148] sm:$0xff]
    %v677 = vld [vmem:[%s2 + $0x150] sm:$0xff]
    %v678 = vld [vmem:[%s2 + $0x158] sm:$0xff]
    %v679 = vld [vmem:[%s2 + $0x160] sm:$0xff]
    %v680 = vld [vmem:[%s2 + $0x168] sm:$0xff]
    %v681 = vld [vmem:[%s2 + $0x170] sm:$0xff]
    %v682 = vld [vmem:[%s2 + $0x178] sm:$0xff]
    %v683 = vld [vmem:[%s2 + $0x180] sm:$0xff]
    %v684 = vld [vmem:[%s2 + $0x188] sm:$0xff]
    %v685 = vld [vmem:[%s2 + $0x190] sm:$0xff]
    %v686 = vld [vmem:[%s2 + $0x198] sm:$0xff]
    %v687 = vld [vmem:[%s2 + $0x1a0] sm:$0xff]
    %v688 = vld [vmem:[%s2 + $0x1a8] sm:$0xff]
    %v689 = vld [vmem:[%s2 + $0x1b0] sm:$0xff]
    %v690 = vld [vmem:[%s2 + $0x1b8] sm:$0xff]
    %v691 = vld [vmem:[%s2 + $0x1c0] sm:$0xff]
    %v692 = vld [vmem:[%s2 + $0x1c8] sm:$0xff]
    %v693 = vld [vmem:[%s2 + $0x1d0] sm:$0xff]
    %v694 = vld [vmem:[%s2 + $0x1d8] sm:$0xff]
    %v695 = vld [vmem:[%s2 + $0x1e0] sm:$0xff]
    %v696 = vld [vmem:[%s2 + $0x1e8] sm:$0xff]
    %v697 = vld [vmem:[%s2 + $0x1f0] sm:$0xff]
    %v698 = vld [vmem:[%s2 + $0x1f8] sm:$0xff]
    %v699 = vld [vmem:[%s2 + $0x200] sm:$0xff]
    %v700 = vld [vmem:[%s2 + $0x208] sm:$0xff]
    %v701 = vld [vmem:[%s2 + $0x210] sm:$0xff]
    %v702 = vld [vmem:[%s2 + $0x218] sm:$0xff]
    %v703 = vld [vmem:[%s2 + $0x220] sm:$0xff]
    %v704 = vld [vmem:[%s2 + $0x228] sm:$0xff]
    %v705 = vld [vmem:[%s2 + $0x230] sm:$0xff]
    %v706 = vld [vmem:[%s2 + $0x238] sm:$0xff]
    %v707 = vld [vmem:[%s2 + $0x240] sm:$0xff]
    %v708 = vld [vmem:[%s2 + $0x248] sm:$0xff]
    %v709 = vld [vmem:[%s2 + $0x250] sm:$0xff]
    %v710 = vld [vmem:[%s2 + $0x258] sm:$0xff]
    %v711 = vld [vmem:[%s2 + $0x260] sm:$0xff]
    %v712 = vld [vmem:[%s2 + $0x268] sm:$0xff]
    %v713 = vld [vmem:[%s2 + $0x270] sm:$0xff]
    %v714 = vld [vmem:[%s2 + $0x278] sm:$0xff]
    %v715 = vld [vmem:[%s2 + $0x280] sm:$0xff]
    %v716 = vld [vmem:[%s2 + $0x288] sm:$0xff]
    %v717 = vld [vmem:[%s2 + $0x290] sm:$0xff]
    %v718 = vld [vmem:[%s2 + $0x298] sm:$0xff]
    %v719 = vld [vmem:[%s2 + $0x2a0] sm:$0xff]
    %v720 = vld [vmem:[%s2 + $0x2a8] sm:$0xff]
    %v721 = vld [vmem:[%s2 + $0x2b0] sm:$0xff]
    %v722 = vld [vmem:[%s2 + $0x2b8] sm:$0xff]
    %v723 = vld [vmem:[%s2 + $0x2c0] sm:$0xff]
    %v724 = vld [vmem:[%s2 + $0x2c8] sm:$0xff]
    %v725 = vld [vmem:[%s2 + $0x2d0] sm:$0xff]
    %v726 = vld [vmem:[%s2 + $0x2d8] sm:$0xff]
    %v727 = vld [vmem:[%s2 + $0x2e0] sm:$0xff]
    %v728 = vld [vmem:[%s2 + $0x2e8] sm:$0xff]
    %v729 = vld [vmem:[%s2 + $0x2f0] sm:$0xff]
    %v730 = vld [vmem:[%s2 + $0x2f8] sm:$0xff]
    %v731 = vld [vmem:[%s2 + $0x300] sm:$0xff]
    %v732 = vld [vmem:[%s2 + $0x308] sm:$0xff]
    %v733 = vld [vmem:[%s2 + $0x310] sm:$0xff]
    %v734 = vld [vmem:[%s2 + $0x318] sm:$0xff]
    %v735 = vld [vmem:[%s2 + $0x320] sm:$0xff]
    %v736 = vld [vmem:[%s2 + $0x328] sm:$0xff]
    %v737 = vld [vmem:[%s2 + $0x330] sm:$0xff]
    %v738 = vld [vmem:[%s2 + $0x338] sm:$0xff]
    %v739 = vld [vmem:[%s2 + $0x340] sm:$0xff]
    %v740 = vld [vmem:[%s2 + $0x348] sm:$0xff]
    %v741 = vld [vmem:[%s2 + $0x350] sm:$0xff]
    %v742 = vld [vmem:[%s2 + $0x358] sm:$0xff]
    %v743 = vld [vmem:[%s2 + $0x360] sm:$0xff]
    %v744 = vld [vmem:[%s2 + $0x368] sm:$0xff]
    %v745 = vld [vmem:[%s2 + $0x370] sm:$0xff]
    %v746 = vld [vmem:[%s2 + $0x378] sm:$0xff]
    %v747 = vld [vmem:[%s2 + $0x380] sm:$0xff]
    %v748 = vld [vmem:[%s2 + $0x388] sm:$0xff]
    %v749 = vld [vmem:[%s2 + $0x390] sm:$0xff]
    %v750 = vld [vmem:[%s2 + $0x398] sm:$0xff]
    %v751 = vld [vmem:[%s2 + $0x3a0] sm:$0xff]
    %v752 = vld [vmem:[%s2 + $0x3a8] sm:$0xff]
    %v753 = vld [vmem:[%s2 + $0x3b0] sm:$0xff]
    %v754 = vld [vmem:[%s2 + $0x3b8] sm:$0xff]
    %v755 = vld [vmem:[%s2 + $0x3c0] sm:$0xff]
    %v756 = vld [vmem:[%s2 + $0x3c8] sm:$0xff]
    %v757 = vld [vmem:[%s2 + $0x3d0] sm:$0xff]
    %v758 = vld [vmem:[%s2 + $0x3d8] sm:$0xff]
    %v759 = vld [vmem:[%s2 + $0x3e0] sm:$0xff]
    %v760 = vld [vmem:[%s2 + $0x3e8] sm:$0xff]
    %v761 = vld [vmem:[%s2 + $0x3f0] sm:$0xff]
    %v762 = vld [vmem:[%s2 + $0x3f8] sm:$0xff]
    %v763 = vpack.c.bf16 %v619, %v619
    %v764 = vpack.c.bf16 %v620, %v620
    %v765 = vpack.c.bf16 %v621, %v621
    %v766 = vpack.c.bf16 %v622, %v622
    %v767 = vpack.c.bf16 %v623, %v623
    %v768 = vpack.c.bf16 %v624, %v624
    %v769 = vpack.c.bf16 %v625, %v625
    %v770 = vpack.c.bf16 %v626, %v626
    %v771 = vld [vmem:[#allocation3] sm:$0xff]
    %v772 = vld [vmem:[#allocation3 + $0x8] sm:$0xff]
    %v773 = vld [vmem:[#allocation3 + $0x10] sm:$0xff]
    %v774 = vld [vmem:[#allocation3 + $0x18] sm:$0xff]
    %v775 = vld [vmem:[#allocation3 + $0x20] sm:$0xff]
    %v776 = vld [vmem:[#allocation3 + $0x28] sm:$0xff]
    %v777 = vld [vmem:[#allocation3 + $0x30] sm:$0xff]
    %v778 = vld [vmem:[#allocation3 + $0x38] sm:$0xff]
    %v779 = vld [vmem:[#allocation3 + $0x40] sm:$0xff]
    %v780 = vld [vmem:[#allocation3 + $0x48] sm:$0xff]
    %v781 = vld [vmem:[#allocation3 + $0x50] sm:$0xff]
    %v782 = vld [vmem:[#allocation3 + $0x58] sm:$0xff]
    %v783 = vld [vmem:[#allocation3 + $0x60] sm:$0xff]
    %v784 = vld [vmem:[#allocation3 + $0x68] sm:$0xff]
    %v785 = vld [vmem:[#allocation3 + $0x70] sm:$0xff]
    %v786 = vld [vmem:[#allocation3 + $0x78] sm:$0xff]
    %v787 = vld [vmem:[#allocation3 + $0x80] sm:$0xff]
    %v788 = vld [vmem:[#allocation3 + $0x88] sm:$0xff]
    %v789 = vld [vmem:[#allocation3 + $0x90] sm:$0xff]
    %v790 = vld [vmem:[#allocation3 + $0x98] sm:$0xff]
    %v791 = vld [vmem:[#allocation3 + $0xa0] sm:$0xff]
    %v792 = vld [vmem:[#allocation3 + $0xa8] sm:$0xff]
    %v793 = vld [vmem:[#allocation3 + $0xb0] sm:$0xff]
    %v794 = vld [vmem:[#allocation3 + $0xb8] sm:$0xff]
    %v795 = vld [vmem:[#allocation3 + $0xc0] sm:$0xff]
    %v796 = vld [vmem:[#allocation3 + $0xc8] sm:$0xff]
    %v797 = vld [vmem:[#allocation3 + $0xd0] sm:$0xff]
    %v798 = vld [vmem:[#allocation3 + $0xd8] sm:$0xff]
    %v799 = vld [vmem:[#allocation3 + $0xe0] sm:$0xff]
    %v800 = vld [vmem:[#allocation3 + $0xe8] sm:$0xff]
    %v801 = vld [vmem:[#allocation3 + $0xf0] sm:$0xff]
    %v802 = vld [vmem:[#allocation3 + $0xf8] sm:$0xff]
    %v803 = vld [vmem:[#allocation3 + $0x100] sm:$0xff]
    %v804 = vld [vmem:[#allocation3 + $0x108] sm:$0xff]
    %v805 = vld [vmem:[#allocation3 + $0x110] sm:$0xff]
    %v806 = vld [vmem:[#allocation3 + $0x118] sm:$0xff]
    %v807 = vld [vmem:[#allocation3 + $0x120] sm:$0xff]
    %v808 = vld [vmem:[#allocation3 + $0x128] sm:$0xff]
    %v809 = vld [vmem:[#allocation3 + $0x130] sm:$0xff]
    %v810 = vld [vmem:[#allocation3 + $0x138] sm:$0xff]
    %v811 = vld [vmem:[#allocation3 + $0x140] sm:$0xff]
    %v812 = vld [vmem:[#allocation3 + $0x148] sm:$0xff]
    %v813 = vld [vmem:[#allocation3 + $0x150] sm:$0xff]
    %v814 = vld [vmem:[#allocation3 + $0x158] sm:$0xff]
    %v815 = vld [vmem:[#allocation3 + $0x160] sm:$0xff]
    %v816 = vld [vmem:[#allocation3 + $0x168] sm:$0xff]
    %v817 = vld [vmem:[#allocation3 + $0x170] sm:$0xff]
    %v818 = vld [vmem:[#allocation3 + $0x178] sm:$0xff]
    %v819 = vld [vmem:[#allocation3 + $0x180] sm:$0xff]
    %v820 = vld [vmem:[#allocation3 + $0x188] sm:$0xff]
    %v821 = vld [vmem:[#allocation3 + $0x190] sm:$0xff]
    %v822 = vld [vmem:[#allocation3 + $0x198] sm:$0xff]
    %v823 = vld [vmem:[#allocation3 + $0x1a0] sm:$0xff]
    %v824 = vld [vmem:[#allocation3 + $0x1a8] sm:$0xff]
    %v825 = vld [vmem:[#allocation3 + $0x1b0] sm:$0xff]
    %v826 = vld [vmem:[#allocation3 + $0x1b8] sm:$0xff]
    %v827 = vld [vmem:[#allocation3 + $0x1c0] sm:$0xff]
    %v828 = vld [vmem:[#allocation3 + $0x1c8] sm:$0xff]
    %v829 = vld [vmem:[#allocation3 + $0x1d0] sm:$0xff]
    %v830 = vld [vmem:[#allocation3 + $0x1d8] sm:$0xff]
    %v831 = vld [vmem:[#allocation3 + $0x1e0] sm:$0xff]
    %v832 = vld [vmem:[#allocation3 + $0x1e8] sm:$0xff]
    %v833 = vld [vmem:[#allocation3 + $0x1f0] sm:$0xff]
    %v834 = vld [vmem:[#allocation3 + $0x1f8] sm:$0xff]
    %v835 = vld [vmem:[#allocation3 + $0x200] sm:$0xff]
    %v836 = vld [vmem:[#allocation3 + $0x208] sm:$0xff]
    %v837 = vld [vmem:[#allocation3 + $0x210] sm:$0xff]
    %v838 = vld [vmem:[#allocation3 + $0x218] sm:$0xff]
    %v839 = vld [vmem:[#allocation3 + $0x220] sm:$0xff]
    %v840 = vld [vmem:[#allocation3 + $0x228] sm:$0xff]
    %v841 = vld [vmem:[#allocation3 + $0x230] sm:$0xff]
    %v842 = vld [vmem:[#allocation3 + $0x238] sm:$0xff]
    %v843 = vld [vmem:[#allocation3 + $0x240] sm:$0xff]
    %v844 = vld [vmem:[#allocation3 + $0x248] sm:$0xff]
    %v845 = vld [vmem:[#allocation3 + $0x250] sm:$0xff]
    %v846 = vld [vmem:[#allocation3 + $0x258] sm:$0xff]
    %v847 = vld [vmem:[#allocation3 + $0x260] sm:$0xff]
    %v848 = vld [vmem:[#allocation3 + $0x268] sm:$0xff]
    %v849 = vld [vmem:[#allocation3 + $0x270] sm:$0xff]
    %v850 = vld [vmem:[#allocation3 + $0x278] sm:$0xff]
    %v851 = vld [vmem:[#allocation3 + $0x280] sm:$0xff]
    %v852 = vld [vmem:[#allocation3 + $0x288] sm:$0xff]
    %v853 = vld [vmem:[#allocation3 + $0x290] sm:$0xff]
    %v854 = vld [vmem:[#allocation3 + $0x298] sm:$0xff]
    %v855 = vld [vmem:[#allocation3 + $0x2a0] sm:$0xff]
    %v856 = vld [vmem:[#allocation3 + $0x2a8] sm:$0xff]
    %v857 = vld [vmem:[#allocation3 + $0x2b0] sm:$0xff]
    %v858 = vld [vmem:[#allocation3 + $0x2b8] sm:$0xff]
    %v859 = vld [vmem:[#allocation3 + $0x2c0] sm:$0xff]
    %v860 = vld [vmem:[#allocation3 + $0x2c8] sm:$0xff]
    %v861 = vld [vmem:[#allocation3 + $0x2d0] sm:$0xff]
    %v862 = vld [vmem:[#allocation3 + $0x2d8] sm:$0xff]
    %v863 = vld [vmem:[#allocation3 + $0x2e0] sm:$0xff]
    %v864 = vld [vmem:[#allocation3 + $0x2e8] sm:$0xff]
    %v865 = vld [vmem:[#allocation3 + $0x2f0] sm:$0xff]
    %v866 = vld [vmem:[#allocation3 + $0x2f8] sm:$0xff]
    %v867 = vld [vmem:[#allocation3 + $0x300] sm:$0xff]
    %v868 = vld [vmem:[#allocation3 + $0x308] sm:$0xff]
    %v869 = vld [vmem:[#allocation3 + $0x310] sm:$0xff]
    %v870 = vld [vmem:[#allocation3 + $0x318] sm:$0xff]
    %v871 = vld [vmem:[#allocation3 + $0x320] sm:$0xff]
    %v872 = vld [vmem:[#allocation3 + $0x328] sm:$0xff]
    %v873 = vld [vmem:[#allocation3 + $0x330] sm:$0xff]
    %v874 = vld [vmem:[#allocation3 + $0x338] sm:$0xff]
    %v875 = vld [vmem:[#allocation3 + $0x340] sm:$0xff]
    %v876 = vld [vmem:[#allocation3 + $0x348] sm:$0xff]
    %v877 = vld [vmem:[#allocation3 + $0x350] sm:$0xff]
    %v878 = vld [vmem:[#allocation3 + $0x358] sm:$0xff]
    %v879 = vld [vmem:[#allocation3 + $0x360] sm:$0xff]
    %v880 = vld [vmem:[#allocation3 + $0x368] sm:$0xff]
    %v881 = vld [vmem:[#allocation3 + $0x370] sm:$0xff]
    %v882 = vld [vmem:[#allocation3 + $0x378] sm:$0xff]
    %v883 = vld [vmem:[#allocation3 + $0x380] sm:$0xff]
    %v884 = vld [vmem:[#allocation3 + $0x388] sm:$0xff]
    %v885 = vld [vmem:[#allocation3 + $0x390] sm:$0xff]
    %v886 = vld [vmem:[#allocation3 + $0x398] sm:$0xff]
    %v887 = vld [vmem:[#allocation3 + $0x3a0] sm:$0xff]
    %v888 = vld [vmem:[#allocation3 + $0x3a8] sm:$0xff]
    %v889 = vld [vmem:[#allocation3 + $0x3b0] sm:$0xff]
    %v890 = vld [vmem:[#allocation3 + $0x3b8] sm:$0xff]
    %v891 = vld [vmem:[#allocation3 + $0x3c0] sm:$0xff]
    %v892 = vld [vmem:[#allocation3 + $0x3c8] sm:$0xff]
    %v893 = vld [vmem:[#allocation3 + $0x3d0] sm:$0xff]
    %v894 = vld [vmem:[#allocation3 + $0x3d8] sm:$0xff]
    %v895 = vld [vmem:[#allocation3 + $0x3e0] sm:$0xff]
    %v896 = vld [vmem:[#allocation3 + $0x3e8] sm:$0xff]
    %v897 = vld [vmem:[#allocation3 + $0x3f0] sm:$0xff]
    %v898 = vld [vmem:[#allocation3 + $0x3f8] sm:$0xff]
    %v907 = vunpack.c.l.b16 %v763
    %v908 = vunpack.c.l.b16 %v764
    %v909 = vunpack.c.l.b16 %v765
    %v910 = vunpack.c.l.b16 %v766
    %v911 = vunpack.c.l.b16 %v767
    %v912 = vunpack.c.l.b16 %v768
    %v913 = vunpack.c.l.b16 %v769
    %v914 = vunpack.c.l.b16 %v770
    %vm915 = vcmask 1041409
    %v916 = vsel %vm915, %v911, %v907
    %v917 = vsel %vm915, %v912, %v908
    %v918 = vsel %vm915, %v913, %v909
    %v919 = vsel %vm915, %v914, %v910
    %v920 = vpack.c.b16 %v916, %v916
    %v921 = vpack.c.b16 %v917, %v917
    %v922 = vpack.c.b16 %v918, %v918
    %v923 = vpack.c.b16 %v919, %v919
    %v1056 = vunpack.c.l.b16 %v771
    %v1057 = vunpack.c.h.b16 %v771
    %v1058 = vunpack.c.l.b16 %v772
    %v1059 = vunpack.c.h.b16 %v772
    %v1060 = vunpack.c.l.b16 %v773
    %v1061 = vunpack.c.h.b16 %v773
    %v1062 = vunpack.c.l.b16 %v774
    %v1063 = vunpack.c.h.b16 %v774
    %v1064 = vunpack.c.l.b16 %v775
    %v1065 = vunpack.c.h.b16 %v775
    %v1066 = vunpack.c.l.b16 %v776
    %v1067 = vunpack.c.h.b16 %v776
    %v1068 = vunpack.c.l.b16 %v777
    %v1069 = vunpack.c.h.b16 %v777
    %v1070 = vunpack.c.l.b16 %v778
    %v1071 = vunpack.c.h.b16 %v778
    %v1072 = vunpack.c.l.b16 %v779
    %v1073 = vunpack.c.h.b16 %v779
    %v1074 = vunpack.c.l.b16 %v780
    %v1075 = vunpack.c.h.b16 %v780
    %v1076 = vunpack.c.l.b16 %v781
    %v1077 = vunpack.c.h.b16 %v781
    %v1078 = vunpack.c.l.b16 %v782
    %v1079 = vunpack.c.h.b16 %v782
    %v1080 = vunpack.c.l.b16 %v783
    %v1081 = vunpack.c.h.b16 %v783
    %v1082 = vunpack.c.l.b16 %v784
    %v1083 = vunpack.c.h.b16 %v784
    %v1084 = vunpack.c.l.b16 %v785
    %v1085 = vunpack.c.h.b16 %v785
    %v1086 = vunpack.c.l.b16 %v786
    %v1087 = vunpack.c.h.b16 %v786
    %v1088 = vunpack.c.l.b16 %v787
    %v1089 = vunpack.c.h.b16 %v787
    %v1090 = vunpack.c.l.b16 %v788
    %v1091 = vunpack.c.h.b16 %v788
    %v1092 = vunpack.c.l.b16 %v789
    %v1093 = vunpack.c.h.b16 %v789
    %v1094 = vunpack.c.l.b16 %v790
    %v1095 = vunpack.c.h.b16 %v790
    %v1096 = vunpack.c.l.b16 %v791
    %v1097 = vunpack.c.h.b16 %v791
    %v1098 = vunpack.c.l.b16 %v792
    %v1099 = vunpack.c.h.b16 %v792
    %v1100 = vunpack.c.l.b16 %v793
    %v1101 = vunpack.c.h.b16 %v793
    %v1102 = vunpack.c.l.b16 %v794
    %v1103 = vunpack.c.h.b16 %v794
    %v1104 = vunpack.c.l.b16 %v795
    %v1105 = vunpack.c.h.b16 %v795
    %v1106 = vunpack.c.l.b16 %v796
    %v1107 = vunpack.c.h.b16 %v796
    %v1108 = vunpack.c.l.b16 %v797
    %v1109 = vunpack.c.h.b16 %v797
    %v1110 = vunpack.c.l.b16 %v798
    %v1111 = vunpack.c.h.b16 %v798
    %v1112 = vunpack.c.l.b16 %v799
    %v1113 = vunpack.c.h.b16 %v799
    %v1114 = vunpack.c.l.b16 %v800
    %v1115 = vunpack.c.h.b16 %v800
    %v1116 = vunpack.c.l.b16 %v801
    %v1117 = vunpack.c.h.b16 %v801
    %v1118 = vunpack.c.l.b16 %v802
    %v1119 = vunpack.c.h.b16 %v802
    %v1120 = vunpack.c.l.b16 %v803
    %v1121 = vunpack.c.h.b16 %v803
    %v1122 = vunpack.c.l.b16 %v804
    %v1123 = vunpack.c.h.b16 %v804
    %v1124 = vunpack.c.l.b16 %v805
    %v1125 = vunpack.c.h.b16 %v805
    %v1126 = vunpack.c.l.b16 %v806
    %v1127 = vunpack.c.h.b16 %v806
    %v1128 = vunpack.c.l.b16 %v807
    %v1129 = vunpack.c.h.b16 %v807
    %v1130 = vunpack.c.l.b16 %v808
    %v1131 = vunpack.c.h.b16 %v808
    %v1132 = vunpack.c.l.b16 %v809
    %v1133 = vunpack.c.h.b16 %v809
    %v1134 = vunpack.c.l.b16 %v810
    %v1135 = vunpack.c.h.b16 %v810
    %v1136 = vunpack.c.l.b16 %v811
    %v1137 = vunpack.c.h.b16 %v811
    %v1138 = vunpack.c.l.b16 %v812
    %v1139 = vunpack.c.h.b16 %v812
    %v1140 = vunpack.c.l.b16 %v813
    %v1141 = vunpack.c.h.b16 %v813
    %v1142 = vunpack.c.l.b16 %v814
    %v1143 = vunpack.c.h.b16 %v814
    %v1144 = vunpack.c.l.b16 %v815
    %v1145 = vunpack.c.h.b16 %v815
    %v1146 = vunpack.c.l.b16 %v816
    %v1147 = vunpack.c.h.b16 %v816
    %v1148 = vunpack.c.l.b16 %v817
    %v1149 = vunpack.c.h.b16 %v817
    %v1150 = vunpack.c.l.b16 %v818
    %v1151 = vunpack.c.h.b16 %v818
    %v1152 = vunpack.c.l.b16 %v819
    %v1153 = vunpack.c.h.b16 %v819
    %v1154 = vunpack.c.l.b16 %v820
    %v1155 = vunpack.c.h.b16 %v820
    %v1156 = vunpack.c.l.b16 %v821
    %v1157 = vunpack.c.h.b16 %v821
    %v1158 = vunpack.c.l.b16 %v822
    %v1159 = vunpack.c.h.b16 %v822
    %v1160 = vunpack.c.l.b16 %v823
    %v1161 = vunpack.c.h.b16 %v823
    %v1162 = vunpack.c.l.b16 %v824
    %v1163 = vunpack.c.h.b16 %v824
    %v1164 = vunpack.c.l.b16 %v825
    %v1165 = vunpack.c.h.b16 %v825
    %v1166 = vunpack.c.l.b16 %v826
    %v1167 = vunpack.c.h.b16 %v826
    %v1168 = vunpack.c.l.b16 %v827
    %v1169 = vunpack.c.h.b16 %v827
    %v1170 = vunpack.c.l.b16 %v828
    %v1171 = vunpack.c.h.b16 %v828
    %v1172 = vunpack.c.l.b16 %v829
    %v1173 = vunpack.c.h.b16 %v829
    %v1174 = vunpack.c.l.b16 %v830
    %v1175 = vunpack.c.h.b16 %v830
    %v1176 = vunpack.c.l.b16 %v831
    %v1177 = vunpack.c.h.b16 %v831
    %v1178 = vunpack.c.l.b16 %v832
    %v1179 = vunpack.c.h.b16 %v832
    %v1180 = vunpack.c.l.b16 %v833
    %v1181 = vunpack.c.h.b16 %v833
    %v1182 = vunpack.c.l.b16 %v834
    %v1183 = vunpack.c.h.b16 %v834
    %v1184 = vunpack.c.l.b16 %v835
    %v1185 = vunpack.c.h.b16 %v835
    %v1186 = vunpack.c.l.b16 %v836
    %v1187 = vunpack.c.h.b16 %v836
    %v1188 = vunpack.c.l.b16 %v837
    %v1189 = vunpack.c.h.b16 %v837
    %v1190 = vunpack.c.l.b16 %v838
    %v1191 = vunpack.c.h.b16 %v838
    %v1192 = vunpack.c.l.b16 %v839
    %v1193 = vunpack.c.h.b16 %v839
    %v1194 = vunpack.c.l.b16 %v840
    %v1195 = vunpack.c.h.b16 %v840
    %v1196 = vunpack.c.l.b16 %v841
    %v1197 = vunpack.c.h.b16 %v841
    %v1198 = vunpack.c.l.b16 %v842
    %v1199 = vunpack.c.h.b16 %v842
    %v1200 = vunpack.c.l.b16 %v843
    %v1201 = vunpack.c.h.b16 %v843
    %v1202 = vunpack.c.l.b16 %v844
    %v1203 = vunpack.c.h.b16 %v844
    %v1204 = vunpack.c.l.b16 %v845
    %v1205 = vunpack.c.h.b16 %v845
    %v1206 = vunpack.c.l.b16 %v846
    %v1207 = vunpack.c.h.b16 %v846
    %v1208 = vunpack.c.l.b16 %v847
    %v1209 = vunpack.c.h.b16 %v847
    %v1210 = vunpack.c.l.b16 %v848
    %v1211 = vunpack.c.h.b16 %v848
    %v1212 = vunpack.c.l.b16 %v849
    %v1213 = vunpack.c.h.b16 %v849
    %v1214 = vunpack.c.l.b16 %v850
    %v1215 = vunpack.c.h.b16 %v850
    %v1216 = vunpack.c.l.b16 %v851
    %v1217 = vunpack.c.h.b16 %v851
    %v1218 = vunpack.c.l.b16 %v852
    %v1219 = vunpack.c.h.b16 %v852
    %v1220 = vunpack.c.l.b16 %v853
    %v1221 = vunpack.c.h.b16 %v853
    %v1222 = vunpack.c.l.b16 %v854
    %v1223 = vunpack.c.h.b16 %v854
    %v1224 = vunpack.c.l.b16 %v855
    %v1225 = vunpack.c.h.b16 %v855
    %v1226 = vunpack.c.l.b16 %v856
    %v1227 = vunpack.c.h.b16 %v856
    %v1228 = vunpack.c.l.b16 %v857
    %v1229 = vunpack.c.h.b16 %v857
    %v1230 = vunpack.c.l.b16 %v858
    %v1231 = vunpack.c.h.b16 %v858
    %v1232 = vunpack.c.l.b16 %v859
    %v1233 = vunpack.c.h.b16 %v859
    %v1234 = vunpack.c.l.b16 %v860
    %v1235 = vunpack.c.h.b16 %v860
    %v1236 = vunpack.c.l.b16 %v861
    %v1237 = vunpack.c.h.b16 %v861
    %v1238 = vunpack.c.l.b16 %v862
    %v1239 = vunpack.c.h.b16 %v862
    %v1240 = vunpack.c.l.b16 %v863
    %v1241 = vunpack.c.h.b16 %v863
    %v1242 = vunpack.c.l.b16 %v864
    %v1243 = vunpack.c.h.b16 %v864
    %v1244 = vunpack.c.l.b16 %v865
    %v1245 = vunpack.c.h.b16 %v865
    %v1246 = vunpack.c.l.b16 %v866
    %v1247 = vunpack.c.h.b16 %v866
    %v1248 = vunpack.c.l.b16 %v867
    %v1249 = vunpack.c.h.b16 %v867
    %v1250 = vunpack.c.l.b16 %v868
    %v1251 = vunpack.c.h.b16 %v868
    %v1252 = vunpack.c.l.b16 %v869
    %v1253 = vunpack.c.h.b16 %v869
    %v1254 = vunpack.c.l.b16 %v870
    %v1255 = vunpack.c.h.b16 %v870
    %v1256 = vunpack.c.l.b16 %v871
    %v1257 = vunpack.c.h.b16 %v871
    %v1258 = vunpack.c.l.b16 %v872
    %v1259 = vunpack.c.h.b16 %v872
    %v1260 = vunpack.c.l.b16 %v873
    %v1261 = vunpack.c.h.b16 %v873
    %v1262 = vunpack.c.l.b16 %v874
    %v1263 = vunpack.c.h.b16 %v874
    %v1264 = vunpack.c.l.b16 %v875
    %v1265 = vunpack.c.h.b16 %v875
    %v1266 = vunpack.c.l.b16 %v876
    %v1267 = vunpack.c.h.b16 %v876
    %v1268 = vunpack.c.l.b16 %v877
    %v1269 = vunpack.c.h.b16 %v877
    %v1270 = vunpack.c.l.b16 %v878
    %v1271 = vunpack.c.h.b16 %v878
    %v1272 = vunpack.c.l.b16 %v879
    %v1273 = vunpack.c.h.b16 %v879
    %v1274 = vunpack.c.l.b16 %v880
    %v1275 = vunpack.c.h.b16 %v880
    %v1276 = vunpack.c.l.b16 %v881
    %v1277 = vunpack.c.h.b16 %v881
    %v1278 = vunpack.c.l.b16 %v882
    %v1279 = vunpack.c.h.b16 %v882
    %v1280 = vunpack.c.l.b16 %v883
    %v1281 = vunpack.c.h.b16 %v883
    %v1282 = vunpack.c.l.b16 %v884
    %v1283 = vunpack.c.h.b16 %v884
    %v1284 = vunpack.c.l.b16 %v885
    %v1285 = vunpack.c.h.b16 %v885
    %v1286 = vunpack.c.l.b16 %v886
    %v1287 = vunpack.c.h.b16 %v886
    %v1288 = vunpack.c.l.b16 %v887
    %v1289 = vunpack.c.h.b16 %v887
    %v1290 = vunpack.c.l.b16 %v888
    %v1291 = vunpack.c.h.b16 %v888
    %v1292 = vunpack.c.l.b16 %v889
    %v1293 = vunpack.c.h.b16 %v889
    %v1294 = vunpack.c.l.b16 %v890
    %v1295 = vunpack.c.h.b16 %v890
    %v1296 = vunpack.c.l.b16 %v891
    %v1297 = vunpack.c.h.b16 %v891
    %v1298 = vunpack.c.l.b16 %v892
    %v1299 = vunpack.c.h.b16 %v892
    %v1300 = vunpack.c.l.b16 %v893
    %v1301 = vunpack.c.h.b16 %v893
    %v1302 = vunpack.c.l.b16 %v894
    %v1303 = vunpack.c.h.b16 %v894
    %v1304 = vunpack.c.l.b16 %v895
    %v1305 = vunpack.c.h.b16 %v895
    %v1306 = vunpack.c.l.b16 %v896
    %v1307 = vunpack.c.h.b16 %v896
    %v1308 = vunpack.c.l.b16 %v897
    %v1309 = vunpack.c.h.b16 %v897
    %v1310 = vunpack.c.l.b16 %v898
    %v1311 = vunpack.c.h.b16 %v898
    %v1312 = vpack.c.b16 %v1060, %v1056
    %v1313 = vpack.c.b16 %v1061, %v1057
    %v1314 = vpack.c.b16 %v1062, %v1058
    %v1315 = vpack.c.b16 %v1063, %v1059
    %v1316 = vpack.c.b16 %v1068, %v1064
    %v1317 = vpack.c.b16 %v1069, %v1065
    %v1318 = vpack.c.b16 %v1070, %v1066
    %v1319 = vpack.c.b16 %v1071, %v1067
    %v1320 = vpack.c.b16 %v1076, %v1072
    %v1321 = vpack.c.b16 %v1077, %v1073
    %v1322 = vpack.c.b16 %v1078, %v1074
    %v1323 = vpack.c.b16 %v1079, %v1075
    %v1324 = vpack.c.b16 %v1084, %v1080
    %v1325 = vpack.c.b16 %v1085, %v1081
    %v1326 = vpack.c.b16 %v1086, %v1082
    %v1327 = vpack.c.b16 %v1087, %v1083
    %v1328 = vpack.c.b16 %v1092, %v1088
    %v1329 = vpack.c.b16 %v1093, %v1089
    %v1330 = vpack.c.b16 %v1094, %v1090
    %v1331 = vpack.c.b16 %v1095, %v1091
    %v1332 = vpack.c.b16 %v1100, %v1096
    %v1333 = vpack.c.b16 %v1101, %v1097
    %v1334 = vpack.c.b16 %v1102, %v1098
    %v1335 = vpack.c.b16 %v1103, %v1099
    %v1336 = vpack.c.b16 %v1108, %v1104
    %v1337 = vpack.c.b16 %v1109, %v1105
    %v1338 = vpack.c.b16 %v1110, %v1106
    %v1339 = vpack.c.b16 %v1111, %v1107
    %v1340 = vpack.c.b16 %v1116, %v1112
    %v1341 = vpack.c.b16 %v1117, %v1113
    %v1342 = vpack.c.b16 %v1118, %v1114
    %v1343 = vpack.c.b16 %v1119, %v1115
    %v1344 = vpack.c.b16 %v1124, %v1120
    %v1345 = vpack.c.b16 %v1125, %v1121
    %v1346 = vpack.c.b16 %v1126, %v1122
    %v1347 = vpack.c.b16 %v1127, %v1123
    %v1348 = vpack.c.b16 %v1132, %v1128
    %v1349 = vpack.c.b16 %v1133, %v1129
    %v1350 = vpack.c.b16 %v1134, %v1130
    %v1351 = vpack.c.b16 %v1135, %v1131
    %v1352 = vpack.c.b16 %v1140, %v1136
    %v1353 = vpack.c.b16 %v1141, %v1137
    %v1354 = vpack.c.b16 %v1142, %v1138
    %v1355 = vpack.c.b16 %v1143, %v1139
    %v1356 = vpack.c.b16 %v1148, %v1144
    %v1357 = vpack.c.b16 %v1149, %v1145
    %v1358 = vpack.c.b16 %v1150, %v1146
    %v1359 = vpack.c.b16 %v1151, %v1147
    %v1360 = vpack.c.b16 %v1156, %v1152
    %v1361 = vpack.c.b16 %v1157, %v1153
    %v1362 = vpack.c.b16 %v1158, %v1154
    %v1363 = vpack.c.b16 %v1159, %v1155
    %v1364 = vpack.c.b16 %v1164, %v1160
    %v1365 = vpack.c.b16 %v1165, %v1161
    %v1366 = vpack.c.b16 %v1166, %v1162
    %v1367 = vpack.c.b16 %v1167, %v1163
    %v1368 = vpack.c.b16 %v1172, %v1168
    %v1369 = vpack.c.b16 %v1173, %v1169
    %v1370 = vpack.c.b16 %v1174, %v1170
    %v1371 = vpack.c.b16 %v1175, %v1171
    %v1372 = vpack.c.b16 %v1180, %v1176
    %v1373 = vpack.c.b16 %v1181, %v1177
    %v1374 = vpack.c.b16 %v1182, %v1178
    %v1375 = vpack.c.b16 %v1183, %v1179
    %v1376 = vpack.c.b16 %v1188, %v1184
    %v1377 = vpack.c.b16 %v1189, %v1185
    %v1378 = vpack.c.b16 %v1190, %v1186
    %v1379 = vpack.c.b16 %v1191, %v1187
    %v1380 = vpack.c.b16 %v1196, %v1192
    %v1381 = vpack.c.b16 %v1197, %v1193
    %v1382 = vpack.c.b16 %v1198, %v1194
    %v1383 = vpack.c.b16 %v1199, %v1195
    %v1384 = vpack.c.b16 %v1204, %v1200
    %v1385 = vpack.c.b16 %v1205, %v1201
    %v1386 = vpack.c.b16 %v1206, %v1202
    %v1387 = vpack.c.b16 %v1207, %v1203
    %v1388 = vpack.c.b16 %v1212, %v1208
    %v1389 = vpack.c.b16 %v1213, %v1209
    %v1390 = vpack.c.b16 %v1214, %v1210
    %v1391 = vpack.c.b16 %v1215, %v1211
    %v1392 = vpack.c.b16 %v1220, %v1216
    %v1393 = vpack.c.b16 %v1221, %v1217
    %v1394 = vpack.c.b16 %v1222, %v1218
    %v1395 = vpack.c.b16 %v1223, %v1219
    %v1396 = vpack.c.b16 %v1228, %v1224
    %v1397 = vpack.c.b16 %v1229, %v1225
    %v1398 = vpack.c.b16 %v1230, %v1226
    %v1399 = vpack.c.b16 %v1231, %v1227
    %v1400 = vpack.c.b16 %v1236, %v1232
    %v1401 = vpack.c.b16 %v1237, %v1233
    %v1402 = vpack.c.b16 %v1238, %v1234
    %v1403 = vpack.c.b16 %v1239, %v1235
    %v1404 = vpack.c.b16 %v1244, %v1240
    %v1405 = vpack.c.b16 %v1245, %v1241
    %v1406 = vpack.c.b16 %v1246, %v1242
    %v1407 = vpack.c.b16 %v1247, %v1243
    %v1408 = vpack.c.b16 %v1252, %v1248
    %v1409 = vpack.c.b16 %v1253, %v1249
    %v1410 = vpack.c.b16 %v1254, %v1250
    %v1411 = vpack.c.b16 %v1255, %v1251
    %v1412 = vpack.c.b16 %v1260, %v1256
    %v1413 = vpack.c.b16 %v1261, %v1257
    %v1414 = vpack.c.b16 %v1262, %v1258
    %v1415 = vpack.c.b16 %v1263, %v1259
    %v1416 = vpack.c.b16 %v1268, %v1264
    %v1417 = vpack.c.b16 %v1269, %v1265
    %v1418 = vpack.c.b16 %v1270, %v1266
    %v1419 = vpack.c.b16 %v1271, %v1267
    %v1420 = vpack.c.b16 %v1276, %v1272
    %v1421 = vpack.c.b16 %v1277, %v1273
    %v1422 = vpack.c.b16 %v1278, %v1274
    %v1423 = vpack.c.b16 %v1279, %v1275
    %v1424 = vpack.c.b16 %v1284, %v1280
    %v1425 = vpack.c.b16 %v1285, %v1281
    %v1426 = vpack.c.b16 %v1286, %v1282
    %v1427 = vpack.c.b16 %v1287, %v1283
    %v1428 = vpack.c.b16 %v1292, %v1288
    %v1429 = vpack.c.b16 %v1293, %v1289
    %v1430 = vpack.c.b16 %v1294, %v1290
    %v1431 = vpack.c.b16 %v1295, %v1291
    %v1432 = vpack.c.b16 %v1300, %v1296
    %v1433 = vpack.c.b16 %v1301, %v1297
    %v1434 = vpack.c.b16 %v1302, %v1298
    %v1435 = vpack.c.b16 %v1303, %v1299
    %v1436 = vpack.c.b16 %v1308, %v1304
    %v1437 = vpack.c.b16 %v1309, %v1305
    %v1438 = vpack.c.b16 %v1310, %v1306
    %v1439 = vpack.c.b16 %v1311, %v1307
    %1568 = vmatprep.subr.bf16.mxu0 %v1313
    %1569 = vmatpush1.bf16.msra.mxu0 %v1312
    %1570 = vmatprep.subr.bf16.mxu0 %v1317
    %1571 = vmatpush1.bf16.msra.mxu0 %v1316
    %1572 = vmatprep.subr.bf16.mxu0 %v1321
    %1573 = vmatpush1.bf16.msra.mxu0 %v1320
    %1574 = vmatprep.subr.bf16.mxu0 %v1325
    %1575 = vmatpush1.bf16.msra.mxu0 %v1324
    %1576 = vmatprep.subr.bf16.mxu0 %v1329
    %1577 = vmatpush1.bf16.msra.mxu0 %v1328
    %1578 = vmatprep.subr.bf16.mxu0 %v1333
    %1579 = vmatpush1.bf16.msra.mxu0 %v1332
    %1580 = vmatprep.subr.bf16.mxu0 %v1337
    %1581 = vmatpush1.bf16.msra.mxu0 %v1336
    %1582 = vmatprep.subr.bf16.mxu0 %v1341
    %1583 = vmatpush1.bf16.msra.mxu0 %v1340
    %1584 = vmatprep.subr.bf16.mxu0 %v1345
    %1585 = vmatpush1.bf16.msra.mxu0 %v1344
    %1586 = vmatprep.subr.bf16.mxu0 %v1349
    %1587 = vmatpush1.bf16.msra.mxu0 %v1348
    %1588 = vmatprep.subr.bf16.mxu0 %v1353
    %1589 = vmatpush1.bf16.msra.mxu0 %v1352
    %1590 = vmatprep.subr.bf16.mxu0 %v1357
    %1591 = vmatpush1.bf16.msra.mxu0 %v1356
    %1592 = vmatprep.subr.bf16.mxu0 %v1361
    %1593 = vmatpush1.bf16.msra.mxu0 %v1360
    %1594 = vmatprep.subr.bf16.mxu0 %v1365
    %1595 = vmatpush1.bf16.msra.mxu0 %v1364
    %1596 = vmatprep.subr.bf16.mxu0 %v1369
    %1597 = vmatpush1.bf16.msra.mxu0 %v1368
    %1598 = vmatprep.subr.bf16.mxu0 %v1373
    %1599 = vmatpush1.bf16.msra.mxu0 %v1372
    %1600 = vmatprep.mubr.bf16.mxu0 %v921
    %1601 = vmatmul.mubr.bf16.gmra.mrb[0].mxu0 %v920
    %v1602 = vpop.f32.mrb[0].mxu0
    %v1603 = vadd.f32 0.0, %v1602
    %v1604 = vpop.f32.mrb[0].mxu0
    %v1605 = vadd.f32 0.0, %v1604
    %v1606 = vpop.f32.mrb[0].mxu0
    %v1607 = vpop.f32.mrb[0].mxu0
    %1608 = vdwg.mxu0
    %1609 = vmatprep.subr.bf16.mxu0 %v1377
    %1610 = vmatpush1.bf16.msra.mxu0 %v1376
    %1611 = vmatprep.subr.bf16.mxu0 %v1381
    %1612 = vmatpush1.bf16.msra.mxu0 %v1380
    %1613 = vmatprep.subr.bf16.mxu0 %v1385
    %1614 = vmatpush1.bf16.msra.mxu0 %v1384
    %1615 = vmatprep.subr.bf16.mxu0 %v1389
    %1616 = vmatpush1.bf16.msra.mxu0 %v1388
    %1617 = vmatprep.subr.bf16.mxu0 %v1393
    %1618 = vmatpush1.bf16.msra.mxu0 %v1392
    %1619 = vmatprep.subr.bf16.mxu0 %v1397
    %1620 = vmatpush1.bf16.msra.mxu0 %v1396
    %1621 = vmatprep.subr.bf16.mxu0 %v1401
    %1622 = vmatpush1.bf16.msra.mxu0 %v1400
    %1623 = vmatprep.subr.bf16.mxu0 %v1405
    %1624 = vmatpush1.bf16.msra.mxu0 %v1404
    %1625 = vmatprep.subr.bf16.mxu0 %v1409
    %1626 = vmatpush1.bf16.msra.mxu0 %v1408
    %1627 = vmatprep.subr.bf16.mxu0 %v1413
    %1628 = vmatpush1.bf16.msra.mxu0 %v1412
    %1629 = vmatprep.subr.bf16.mxu0 %v1417
    %1630 = vmatpush1.bf16.msra.mxu0 %v1416
    %1631 = vmatprep.subr.bf16.mxu0 %v1421
    %1632 = vmatpush1.bf16.msra.mxu0 %v1420
    %1633 = vmatprep.subr.bf16.mxu0 %v1425
    %1634 = vmatpush1.bf16.msra.mxu0 %v1424
    %1635 = vmatprep.subr.bf16.mxu0 %v1429
    %1636 = vmatpush1.bf16.msra.mxu0 %v1428
    %1637 = vmatprep.subr.bf16.mxu0 %v1433
    %1638 = vmatpush1.bf16.msra.mxu0 %v1432
    %1639 = vmatprep.subr.bf16.mxu0 %v1437
    %1640 = vmatpush1.bf16.msra.mxu0 %v1436
    %1641 = vmatprep.mubr.bf16.mxu0 %v923
    %1642 = vmatmul.mubr.bf16.gmra.mrb[0].mxu0 %v922
    %v1643 = vpop.f32.mrb[0].mxu0
    %v1644 = vadd.f32 %v1603, %v1643
    %v1645 = vpop.f32.mrb[0].mxu0
    %v1646 = vadd.f32 %v1605, %v1645
    %v1647 = vpop.f32.mrb[0].mxu0
    %v1648 = vpop.f32.mrb[0].mxu0
    %1649 = vdwg.mxu0
    %1650 = vmatprep.subr.bf16.mxu0 %v1315
    %1651 = vmatpush1.bf16.msra.mxu0 %v1314
    %1652 = vmatprep.subr.bf16.mxu0 %v1319
    %1653 = vmatpush1.bf16.msra.mxu0 %v1318
    %1654 = vmatprep.subr.bf16.mxu0 %v1323
    %1655 = vmatpush1.bf16.msra.mxu0 %v1322
    %1656 = vmatprep.subr.bf16.mxu0 %v1327
    %1657 = vmatpush1.bf16.msra.mxu0 %v1326
    %1658 = vmatprep.subr.bf16.mxu0 %v1331
    %1659 = vmatpush1.bf16.msra.mxu0 %v1330
    %1660 = vmatprep.subr.bf16.mxu0 %v1335
    %1661 = vmatpush1.bf16.msra.mxu0 %v1334
    %1662 = vmatprep.subr.bf16.mxu0 %v1339
    %1663 = vmatpush1.bf16.msra.mxu0 %v1338
    %1664 = vmatprep.subr.bf16.mxu0 %v1343
    %1665 = vmatpush1.bf16.msra.mxu0 %v1342
    %1666 = vmatprep.subr.bf16.mxu0 %v1347
    %1667 = vmatpush1.bf16.msra.mxu0 %v1346
    %1668 = vmatprep.subr.bf16.mxu0 %v1351
    %1669 = vmatpush1.bf16.msra.mxu0 %v1350
    %1670 = vmatprep.subr.bf16.mxu0 %v1355
    %1671 = vmatpush1.bf16.msra.mxu0 %v1354
    %1672 = vmatprep.subr.bf16.mxu0 %v1359
    %1673 = vmatpush1.bf16.msra.mxu0 %v1358
    %1674 = vmatprep.subr.bf16.mxu0 %v1363
    %1675 = vmatpush1.bf16.msra.mxu0 %v1362
    %1676 = vmatprep.subr.bf16.mxu0 %v1367
    %1677 = vmatpush1.bf16.msra.mxu0 %v1366
    %1678 = vmatprep.subr.bf16.mxu0 %v1371
    %1679 = vmatpush1.bf16.msra.mxu0 %v1370
    %1680 = vmatprep.subr.bf16.mxu0 %v1375
    %1681 = vmatpush1.bf16.msra.mxu0 %v1374
    %1682 = vmatprep.mubr.bf16.mxu0 %v921
    %1683 = vmatmul.mubr.bf16.gmra.mrb[0].mxu0 %v920
    %v1684 = vpop.f32.mrb[0].mxu0
    %v1685 = vadd.f32 0.0, %v1684
    %v1686 = vpop.f32.mrb[0].mxu0
    %v1687 = vadd.f32 0.0, %v1686
    %v1688 = vpop.f32.mrb[0].mxu0
    %v1689 = vpop.f32.mrb[0].mxu0
    %1690 = vdwg.mxu0
    %1691 = vmatprep.subr.bf16.mxu0 %v1379
    %1692 = vmatpush1.bf16.msra.mxu0 %v1378
    %1693 = vmatprep.subr.bf16.mxu0 %v1383
    %1694 = vmatpush1.bf16.msra.mxu0 %v1382
    %1695 = vmatprep.subr.bf16.mxu0 %v1387
    %1696 = vmatpush1.bf16.msra.mxu0 %v1386
    %1697 = vmatprep.subr.bf16.mxu0 %v1391
    %1698 = vmatpush1.bf16.msra.mxu0 %v1390
    %1699 = vmatprep.subr.bf16.mxu0 %v1395
    %1700 = vmatpush1.bf16.msra.mxu0 %v1394
    %1701 = vmatprep.subr.bf16.mxu0 %v1399
    %1702 = vmatpush1.bf16.msra.mxu0 %v1398
    %1703 = vmatprep.subr.bf16.mxu0 %v1403
    %1704 = vmatpush1.bf16.msra.mxu0 %v1402
    %1705 = vmatprep.subr.bf16.mxu0 %v1407
    %1706 = vmatpush1.bf16.msra.mxu0 %v1406
    %1707 = vmatprep.subr.bf16.mxu0 %v1411
    %1708 = vmatpush1.bf16.msra.mxu0 %v1410
    %1709 = vmatprep.subr.bf16.mxu0 %v1415
    %1710 = vmatpush1.bf16.msra.mxu0 %v1414
    %1711 = vmatprep.subr.bf16.mxu0 %v1419
    %1712 = vmatpush1.bf16.msra.mxu0 %v1418
    %1713 = vmatprep.subr.bf16.mxu0 %v1423
    %1714 = vmatpush1.bf16.msra.mxu0 %v1422
    %1715 = vmatprep.subr.bf16.mxu0 %v1427
    %1716 = vmatpush1.bf16.msra.mxu0 %v1426
    %1717 = vmatprep.subr.bf16.mxu0 %v1431
    %1718 = vmatpush1.bf16.msra.mxu0 %v1430
    %1719 = vmatprep.subr.bf16.mxu0 %v1435
    %1720 = vmatpush1.bf16.msra.mxu0 %v1434
    %1721 = vmatprep.subr.bf16.mxu0 %v1439
    %1722 = vmatpush1.bf16.msra.mxu0 %v1438
    %1723 = vmatprep.mubr.bf16.mxu0 %v923
    %1724 = vmatmul.mubr.bf16.gmra.mrb[0].mxu0 %v922
    %v1725 = vpop.f32.mrb[0].mxu0
    %v1726 = vadd.f32 %v1685, %v1725
    %v1727 = vpop.f32.mrb[0].mxu0
    %v1728 = vadd.f32 %v1687, %v1727
    %v1729 = vpop.f32.mrb[0].mxu0
    %v1730 = vpop.f32.mrb[0].mxu0
    %1731 = vdwg.mxu0
    %v1740 = vunpack.c.l.b16 %v627
    %v1741 = vunpack.c.l.b16 %v628
    %v1742 = vunpack.c.l.b16 %v629
    %v1743 = vunpack.c.l.b16 %v630
    %v1744 = vunpack.c.l.b16 %v631
    %v1745 = vunpack.c.l.b16 %v632
    %v1746 = vunpack.c.l.b16 %v633
    %v1747 = vunpack.c.l.b16 %v634
    %v1748 = vsel %vm915, %v1744, %v1740
    %v1749 = vsel %vm915, %v1745, %v1741
    %v1750 = vsel %vm915, %v1746, %v1742
    %v1751 = vsel %vm915, %v1747, %v1743
    %v1752 = vpack.c.b16 %v1748, %v1748
    %v1753 = vpack.c.b16 %v1749, %v1749
    %v1754 = vpack.c.b16 %v1750, %v1750
    %v1755 = vpack.c.b16 %v1751, %v1751
    %v1888 = vunpack.c.l.b16 %v635
    %v1889 = vunpack.c.h.b16 %v635
    %v1890 = vunpack.c.l.b16 %v636
    %v1891 = vunpack.c.h.b16 %v636
    %v1892 = vunpack.c.l.b16 %v637
    %v1893 = vunpack.c.h.b16 %v637
    %v1894 = vunpack.c.l.b16 %v638
    %v1895 = vunpack.c.h.b16 %v638
    %v1896 = vunpack.c.l.b16 %v639
    %v1897 = vunpack.c.h.b16 %v639
    %v1898 = vunpack.c.l.b16 %v640
    %v1899 = vunpack.c.h.b16 %v640
    %v1900 = vunpack.c.l.b16 %v641
    %v1901 = vunpack.c.h.b16 %v641
    %v1902 = vunpack.c.l.b16 %v642
    %v1903 = vunpack.c.h.b16 %v642
    %v1904 = vunpack.c.l.b16 %v643
    %v1905 = vunpack.c.h.b16 %v643
    %v1906 = vunpack.c.l.b16 %v644
    %v1907 = vunpack.c.h.b16 %v644
    %v1908 = vunpack.c.l.b16 %v645
    %v1909 = vunpack.c.h.b16 %v645
    %v1910 = vunpack.c.l.b16 %v646
    %v1911 = vunpack.c.h.b16 %v646
    %v1912 = vunpack.c.l.b16 %v647
    %v1913 = vunpack.c.h.b16 %v647
    %v1914 = vunpack.c.l.b16 %v648
    %v1915 = vunpack.c.h.b16 %v648
    %v1916 = vunpack.c.l.b16 %v649
    %v1917 = vunpack.c.h.b16 %v649
    %v1918 = vunpack.c.l.b16 %v650
    %v1919 = vunpack.c.h.b16 %v650
    %v1920 = vunpack.c.l.b16 %v651
    %v1921 = vunpack.c.h.b16 %v651
    %v1922 = vunpack.c.l.b16 %v652
    %v1923 = vunpack.c.h.b16 %v652
    %v1924 = vunpack.c.l.b16 %v653
    %v1925 = vunpack.c.h.b16 %v653
    %v1926 = vunpack.c.l.b16 %v654
    %v1927 = vunpack.c.h.b16 %v654
    %v1928 = vunpack.c.l.b16 %v655
    %v1929 = vunpack.c.h.b16 %v655
    %v1930 = vunpack.c.l.b16 %v656
    %v1931 = vunpack.c.h.b16 %v656
    %v1932 = vunpack.c.l.b16 %v657
    %v1933 = vunpack.c.h.b16 %v657
    %v1934 = vunpack.c.l.b16 %v658
    %v1935 = vunpack.c.h.b16 %v658
    %v1936 = vunpack.c.l.b16 %v659
    %v1937 = vunpack.c.h.b16 %v659
    %v1938 = vunpack.c.l.b16 %v660
    %v1939 = vunpack.c.h.b16 %v660
    %v1940 = vunpack.c.l.b16 %v661
    %v1941 = vunpack.c.h.b16 %v661
    %v1942 = vunpack.c.l.b16 %v662
    %v1943 = vunpack.c.h.b16 %v662
    %v1944 = vunpack.c.l.b16 %v663
    %v1945 = vunpack.c.h.b16 %v663
    %v1946 = vunpack.c.l.b16 %v664
    %v1947 = vunpack.c.h.b16 %v664
    %v1948 = vunpack.c.l.b16 %v665
    %v1949 = vunpack.c.h.b16 %v665
    %v1950 = vunpack.c.l.b16 %v666
    %v1951 = vunpack.c.h.b16 %v666
    %v1952 = vunpack.c.l.b16 %v667
    %v1953 = vunpack.c.h.b16 %v667
    %v1954 = vunpack.c.l.b16 %v668
    %v1955 = vunpack.c.h.b16 %v668
    %v1956 = vunpack.c.l.b16 %v669
    %v1957 = vunpack.c.h.b16 %v669
    %v1958 = vunpack.c.l.b16 %v670
    %v1959 = vunpack.c.h.b16 %v670
    %v1960 = vunpack.c.l.b16 %v671
    %v1961 = vunpack.c.h.b16 %v671
    %v1962 = vunpack.c.l.b16 %v672
    %v1963 = vunpack.c.h.b16 %v672
    %v1964 = vunpack.c.l.b16 %v673
    %v1965 = vunpack.c.h.b16 %v673
    %v1966 = vunpack.c.l.b16 %v674
    %v1967 = vunpack.c.h.b16 %v674
    %v1968 = vunpack.c.l.b16 %v675
    %v1969 = vunpack.c.h.b16 %v675
    %v1970 = vunpack.c.l.b16 %v676
    %v1971 = vunpack.c.h.b16 %v676
    %v1972 = vunpack.c.l.b16 %v677
    %v1973 = vunpack.c.h.b16 %v677
    %v1974 = vunpack.c.l.b16 %v678
    %v1975 = vunpack.c.h.b16 %v678
    %v1976 = vunpack.c.l.b16 %v679
    %v1977 = vunpack.c.h.b16 %v679
    %v1978 = vunpack.c.l.b16 %v680
    %v1979 = vunpack.c.h.b16 %v680
    %v1980 = vunpack.c.l.b16 %v681
    %v1981 = vunpack.c.h.b16 %v681
    %v1982 = vunpack.c.l.b16 %v682
    %v1983 = vunpack.c.h.b16 %v682
    %v1984 = vunpack.c.l.b16 %v683
    %v1985 = vunpack.c.h.b16 %v683
    %v1986 = vunpack.c.l.b16 %v684
    %v1987 = vunpack.c.h.b16 %v684
    %v1988 = vunpack.c.l.b16 %v685
    %v1989 = vunpack.c.h.b16 %v685
    %v1990 = vunpack.c.l.b16 %v686
    %v1991 = vunpack.c.h.b16 %v686
    %v1992 = vunpack.c.l.b16 %v687
    %v1993 = vunpack.c.h.b16 %v687
    %v1994 = vunpack.c.l.b16 %v688
    %v1995 = vunpack.c.h.b16 %v688
    %v1996 = vunpack.c.l.b16 %v689
    %v1997 = vunpack.c.h.b16 %v689
    %v1998 = vunpack.c.l.b16 %v690
    %v1999 = vunpack.c.h.b16 %v690
    %v2000 = vunpack.c.l.b16 %v691
    %v2001 = vunpack.c.h.b16 %v691
    %v2002 = vunpack.c.l.b16 %v692
    %v2003 = vunpack.c.h.b16 %v692
    %v2004 = vunpack.c.l.b16 %v693
    %v2005 = vunpack.c.h.b16 %v693
    %v2006 = vunpack.c.l.b16 %v694
    %v2007 = vunpack.c.h.b16 %v694
    %v2008 = vunpack.c.l.b16 %v695
    %v2009 = vunpack.c.h.b16 %v695
    %v2010 = vunpack.c.l.b16 %v696
    %v2011 = vunpack.c.h.b16 %v696
    %v2012 = vunpack.c.l.b16 %v697
    %v2013 = vunpack.c.h.b16 %v697
    %v2014 = vunpack.c.l.b16 %v698
    %v2015 = vunpack.c.h.b16 %v698
    %v2016 = vunpack.c.l.b16 %v699
    %v2017 = vunpack.c.h.b16 %v699
    %v2018 = vunpack.c.l.b16 %v700
    %v2019 = vunpack.c.h.b16 %v700
    %v2020 = vunpack.c.l.b16 %v701
    %v2021 = vunpack.c.h.b16 %v701
    %v2022 = vunpack.c.l.b16 %v702
    %v2023 = vunpack.c.h.b16 %v702
    %v2024 = vunpack.c.l.b16 %v703
    %v2025 = vunpack.c.h.b16 %v703
    %v2026 = vunpack.c.l.b16 %v704
    %v2027 = vunpack.c.h.b16 %v704
    %v2028 = vunpack.c.l.b16 %v705
    %v2029 = vunpack.c.h.b16 %v705
    %v2030 = vunpack.c.l.b16 %v706
    %v2031 = vunpack.c.h.b16 %v706
    %v2032 = vunpack.c.l.b16 %v707
    %v2033 = vunpack.c.h.b16 %v707
    %v2034 = vunpack.c.l.b16 %v708
    %v2035 = vunpack.c.h.b16 %v708
    %v2036 = vunpack.c.l.b16 %v709
    %v2037 = vunpack.c.h.b16 %v709
    %v2038 = vunpack.c.l.b16 %v710
    %v2039 = vunpack.c.h.b16 %v710
    %v2040 = vunpack.c.l.b16 %v711
    %v2041 = vunpack.c.h.b16 %v711
    %v2042 = vunpack.c.l.b16 %v712
    %v2043 = vunpack.c.h.b16 %v712
    %v2044 = vunpack.c.l.b16 %v713
    %v2045 = vunpack.c.h.b16 %v713
    %v2046 = vunpack.c.l.b16 %v714
    %v2047 = vunpack.c.h.b16 %v714
    %v2048 = vunpack.c.l.b16 %v715
    %v2049 = vunpack.c.h.b16 %v715
    %v2050 = vunpack.c.l.b16 %v716
    %v2051 = vunpack.c.h.b16 %v716
    %v2052 = vunpack.c.l.b16 %v717
    %v2053 = vunpack.c.h.b16 %v717
    %v2054 = vunpack.c.l.b16 %v718
    %v2055 = vunpack.c.h.b16 %v718
    %v2056 = vunpack.c.l.b16 %v719
    %v2057 = vunpack.c.h.b16 %v719
    %v2058 = vunpack.c.l.b16 %v720
    %v2059 = vunpack.c.h.b16 %v720
    %v2060 = vunpack.c.l.b16 %v721
    %v2061 = vunpack.c.h.b16 %v721
    %v2062 = vunpack.c.l.b16 %v722
    %v2063 = vunpack.c.h.b16 %v722
    %v2064 = vunpack.c.l.b16 %v723
    %v2065 = vunpack.c.h.b16 %v723
    %v2066 = vunpack.c.l.b16 %v724
    %v2067 = vunpack.c.h.b16 %v724
    %v2068 = vunpack.c.l.b16 %v725
    %v2069 = vunpack.c.h.b16 %v725
    %v2070 = vunpack.c.l.b16 %v726
    %v2071 = vunpack.c.h.b16 %v726
    %v2072 = vunpack.c.l.b16 %v727
    %v2073 = vunpack.c.h.b16 %v727
    %v2074 = vunpack.c.l.b16 %v728
    %v2075 = vunpack.c.h.b16 %v728
    %v2076 = vunpack.c.l.b16 %v729
    %v2077 = vunpack.c.h.b16 %v729
    %v2078 = vunpack.c.l.b16 %v730
    %v2079 = vunpack.c.h.b16 %v730
    %v2080 = vunpack.c.l.b16 %v731
    %v2081 = vunpack.c.h.b16 %v731
    %v2082 = vunpack.c.l.b16 %v732
    %v2083 = vunpack.c.h.b16 %v732
    %v2084 = vunpack.c.l.b16 %v733
    %v2085 = vunpack.c.h.b16 %v733
    %v2086 = vunpack.c.l.b16 %v734
    %v2087 = vunpack.c.h.b16 %v734
    %v2088 = vunpack.c.l.b16 %v735
    %v2089 = vunpack.c.h.b16 %v735
    %v2090 = vunpack.c.l.b16 %v736
    %v2091 = vunpack.c.h.b16 %v736
    %v2092 = vunpack.c.l.b16 %v737
    %v2093 = vunpack.c.h.b16 %v737
    %v2094 = vunpack.c.l.b16 %v738
    %v2095 = vunpack.c.h.b16 %v738
    %v2096 = vunpack.c.l.b16 %v739
    %v2097 = vunpack.c.h.b16 %v739
    %v2098 = vunpack.c.l.b16 %v740
    %v2099 = vunpack.c.h.b16 %v740
    %v2100 = vunpack.c.l.b16 %v741
    %v2101 = vunpack.c.h.b16 %v741
    %v2102 = vunpack.c.l.b16 %v742
    %v2103 = vunpack.c.h.b16 %v742
    %v2104 = vunpack.c.l.b16 %v743
    %v2105 = vunpack.c.h.b16 %v743
    %v2106 = vunpack.c.l.b16 %v744
    %v2107 = vunpack.c.h.b16 %v744
    %v2108 = vunpack.c.l.b16 %v745
    %v2109 = vunpack.c.h.b16 %v745
    %v2110 = vunpack.c.l.b16 %v746
    %v2111 = vunpack.c.h.b16 %v746
    %v2112 = vunpack.c.l.b16 %v747
    %v2113 = vunpack.c.h.b16 %v747
    %v2114 = vunpack.c.l.b16 %v748
    %v2115 = vunpack.c.h.b16 %v748
    %v2116 = vunpack.c.l.b16 %v749
    %v2117 = vunpack.c.h.b16 %v749
    %v2118 = vunpack.c.l.b16 %v750
    %v2119 = vunpack.c.h.b16 %v750
    %v2120 = vunpack.c.l.b16 %v751
    %v2121 = vunpack.c.h.b16 %v751
    %v2122 = vunpack.c.l.b16 %v752
    %v2123 = vunpack.c.h.b16 %v752
    %v2124 = vunpack.c.l.b16 %v753
    %v2125 = vunpack.c.h.b16 %v753
    %v2126 = vunpack.c.l.b16 %v754
    %v2127 = vunpack.c.h.b16 %v754
    %v2128 = vunpack.c.l.b16 %v755
    %v2129 = vunpack.c.h.b16 %v755
    %v2130 = vunpack.c.l.b16 %v756
    %v2131 = vunpack.c.h.b16 %v756
    %v2132 = vunpack.c.l.b16 %v757
    %v2133 = vunpack.c.h.b16 %v757
    %v2134 = vunpack.c.l.b16 %v758
    %v2135 = vunpack.c.h.b16 %v758
    %v2136 = vunpack.c.l.b16 %v759
    %v2137 = vunpack.c.h.b16 %v759
    %v2138 = vunpack.c.l.b16 %v760
    %v2139 = vunpack.c.h.b16 %v760
    %v2140 = vunpack.c.l.b16 %v761
    %v2141 = vunpack.c.h.b16 %v761
    %v2142 = vunpack.c.l.b16 %v762
    %v2143 = vunpack.c.h.b16 %v762
    %v2144 = vpack.c.b16 %v1892, %v1888
    %v2145 = vpack.c.b16 %v1893, %v1889
    %v2146 = vpack.c.b16 %v1894, %v1890
    %v2147 = vpack.c.b16 %v1895, %v1891
    %v2148 = vpack.c.b16 %v1900, %v1896
    %v2149 = vpack.c.b16 %v1901, %v1897
    %v2150 = vpack.c.b16 %v1902, %v1898
    %v2151 = vpack.c.b16 %v1903, %v1899
    %v2152 = vpack.c.b16 %v1908, %v1904
    %v2153 = vpack.c.b16 %v1909, %v1905
    %v2154 = vpack.c.b16 %v1910, %v1906
    %v2155 = vpack.c.b16 %v1911, %v1907
    %v2156 = vpack.c.b16 %v1916, %v1912
    %v2157 = vpack.c.b16 %v1917, %v1913
    %v2158 = vpack.c.b16 %v1918, %v1914
    %v2159 = vpack.c.b16 %v1919, %v1915
    %v2160 = vpack.c.b16 %v1924, %v1920
    %v2161 = vpack.c.b16 %v1925, %v1921
    %v2162 = vpack.c.b16 %v1926, %v1922
    %v2163 = vpack.c.b16 %v1927, %v1923
    %v2164 = vpack.c.b16 %v1932, %v1928
    %v2165 = vpack.c.b16 %v1933, %v1929
    %v2166 = vpack.c.b16 %v1934, %v1930
    %v2167 = vpack.c.b16 %v1935, %v1931
    %v2168 = vpack.c.b16 %v1940, %v1936
    %v2169 = vpack.c.b16 %v1941, %v1937
    %v2170 = vpack.c.b16 %v1942, %v1938
    %v2171 = vpack.c.b16 %v1943, %v1939
    %v2172 = vpack.c.b16 %v1948, %v1944
    %v2173 = vpack.c.b16 %v1949, %v1945
    %v2174 = vpack.c.b16 %v1950, %v1946
    %v2175 = vpack.c.b16 %v1951, %v1947
    %v2176 = vpack.c.b16 %v1956, %v1952
    %v2177 = vpack.c.b16 %v1957, %v1953
    %v2178 = vpack.c.b16 %v1958, %v1954
    %v2179 = vpack.c.b16 %v1959, %v1955
    %v2180 = vpack.c.b16 %v1964, %v1960
    %v2181 = vpack.c.b16 %v1965, %v1961
    %v2182 = vpack.c.b16 %v1966, %v1962
    %v2183 = vpack.c.b16 %v1967, %v1963
    %v2184 = vpack.c.b16 %v1972, %v1968
    %v2185 = vpack.c.b16 %v1973, %v1969
    %v2186 = vpack.c.b16 %v1974, %v1970
    %v2187 = vpack.c.b16 %v1975, %v1971
    %v2188 = vpack.c.b16 %v1980, %v1976
    %v2189 = vpack.c.b16 %v1981, %v1977
    %v2190 = vpack.c.b16 %v1982, %v1978
    %v2191 = vpack.c.b16 %v1983, %v1979
    %v2192 = vpack.c.b16 %v1988, %v1984
    %v2193 = vpack.c.b16 %v1989, %v1985
    %v2194 = vpack.c.b16 %v1990, %v1986
    %v2195 = vpack.c.b16 %v1991, %v1987
    %v2196 = vpack.c.b16 %v1996, %v1992
    %v2197 = vpack.c.b16 %v1997, %v1993
    %v2198 = vpack.c.b16 %v1998, %v1994
    %v2199 = vpack.c.b16 %v1999, %v1995
    %v2200 = vpack.c.b16 %v2004, %v2000
    %v2201 = vpack.c.b16 %v2005, %v2001
    %v2202 = vpack.c.b16 %v2006, %v2002
    %v2203 = vpack.c.b16 %v2007, %v2003
    %v2204 = vpack.c.b16 %v2012, %v2008
    %v2205 = vpack.c.b16 %v2013, %v2009
    %v2206 = vpack.c.b16 %v2014, %v2010
    %v2207 = vpack.c.b16 %v2015, %v2011
    %v2208 = vpack.c.b16 %v2020, %v2016
    %v2209 = vpack.c.b16 %v2021, %v2017
    %v2210 = vpack.c.b16 %v2022, %v2018
    %v2211 = vpack.c.b16 %v2023, %v2019
    %v2212 = vpack.c.b16 %v2028, %v2024
    %v2213 = vpack.c.b16 %v2029, %v2025
    %v2214 = vpack.c.b16 %v2030, %v2026
    %v2215 = vpack.c.b16 %v2031, %v2027
    %v2216 = vpack.c.b16 %v2036, %v2032
    %v2217 = vpack.c.b16 %v2037, %v2033
    %v2218 = vpack.c.b16 %v2038, %v2034
    %v2219 = vpack.c.b16 %v2039, %v2035
    %v2220 = vpack.c.b16 %v2044, %v2040
    %v2221 = vpack.c.b16 %v2045, %v2041
    %v2222 = vpack.c.b16 %v2046, %v2042
    %v2223 = vpack.c.b16 %v2047, %v2043
    %v2224 = vpack.c.b16 %v2052, %v2048
    %v2225 = vpack.c.b16 %v2053, %v2049
    %v2226 = vpack.c.b16 %v2054, %v2050
    %v2227 = vpack.c.b16 %v2055, %v2051
    %v2228 = vpack.c.b16 %v2060, %v2056
    %v2229 = vpack.c.b16 %v2061, %v2057
    %v2230 = vpack.c.b16 %v2062, %v2058
    %v2231 = vpack.c.b16 %v2063, %v2059
    %v2232 = vpack.c.b16 %v2068, %v2064
    %v2233 = vpack.c.b16 %v2069, %v2065
    %v2234 = vpack.c.b16 %v2070, %v2066
    %v2235 = vpack.c.b16 %v2071, %v2067
    %v2236 = vpack.c.b16 %v2076, %v2072
    %v2237 = vpack.c.b16 %v2077, %v2073
    %v2238 = vpack.c.b16 %v2078, %v2074
    %v2239 = vpack.c.b16 %v2079, %v2075
    %v2240 = vpack.c.b16 %v2084, %v2080
    %v2241 = vpack.c.b16 %v2085, %v2081
    %v2242 = vpack.c.b16 %v2086, %v2082
    %v2243 = vpack.c.b16 %v2087, %v2083
    %v2244 = vpack.c.b16 %v2092, %v2088
    %v2245 = vpack.c.b16 %v2093, %v2089
    %v2246 = vpack.c.b16 %v2094, %v2090
    %v2247 = vpack.c.b16 %v2095, %v2091
    %v2248 = vpack.c.b16 %v2100, %v2096
    %v2249 = vpack.c.b16 %v2101, %v2097
    %v2250 = vpack.c.b16 %v2102, %v2098
    %v2251 = vpack.c.b16 %v2103, %v2099
    %v2252 = vpack.c.b16 %v2108, %v2104
    %v2253 = vpack.c.b16 %v2109, %v2105
    %v2254 = vpack.c.b16 %v2110, %v2106
    %v2255 = vpack.c.b16 %v2111, %v2107
    %v2256 = vpack.c.b16 %v2116, %v2112
    %v2257 = vpack.c.b16 %v2117, %v2113
    %v2258 = vpack.c.b16 %v2118, %v2114
    %v2259 = vpack.c.b16 %v2119, %v2115
    %v2260 = vpack.c.b16 %v2124, %v2120
    %v2261 = vpack.c.b16 %v2125, %v2121
    %v2262 = vpack.c.b16 %v2126, %v2122
    %v2263 = vpack.c.b16 %v2127, %v2123
    %v2264 = vpack.c.b16 %v2132, %v2128
    %v2265 = vpack.c.b16 %v2133, %v2129
    %v2266 = vpack.c.b16 %v2134, %v2130
    %v2267 = vpack.c.b16 %v2135, %v2131
    %v2268 = vpack.c.b16 %v2140, %v2136
    %v2269 = vpack.c.b16 %v2141, %v2137
    %v2270 = vpack.c.b16 %v2142, %v2138
    %v2271 = vpack.c.b16 %v2143, %v2139
    %2400 = vmatprep.subr.bf16.mxu0 %v2145
    %2401 = vmatpush1.bf16.msra.mxu0 %v2144
    %2402 = vmatprep.subr.bf16.mxu0 %v2149
    %2403 = vmatpush1.bf16.msra.mxu0 %v2148
    %2404 = vmatprep.subr.bf16.mxu0 %v2153
    %2405 = vmatpush1.bf16.msra.mxu0 %v2152
    %2406 = vmatprep.subr.bf16.mxu0 %v2157
    %2407 = vmatpush1.bf16.msra.mxu0 %v2156
    %2408 = vmatprep.subr.bf16.mxu0 %v2161
    %2409 = vmatpush1.bf16.msra.mxu0 %v2160
    %2410 = vmatprep.subr.bf16.mxu0 %v2165
    %2411 = vmatpush1.bf16.msra.mxu0 %v2164
    %2412 = vmatprep.subr.bf16.mxu0 %v2169
    %2413 = vmatpush1.bf16.msra.mxu0 %v2168
    %2414 = vmatprep.subr.bf16.mxu0 %v2173
    %2415 = vmatpush1.bf16.msra.mxu0 %v2172
    %2416 = vmatprep.subr.bf16.mxu0 %v2177
    %2417 = vmatpush1.bf16.msra.mxu0 %v2176
    %2418 = vmatprep.subr.bf16.mxu0 %v2181
    %2419 = vmatpush1.bf16.msra.mxu0 %v2180
    %2420 = vmatprep.subr.bf16.mxu0 %v2185
    %2421 = vmatpush1.bf16.msra.mxu0 %v2184
    %2422 = vmatprep.subr.bf16.mxu0 %v2189
    %2423 = vmatpush1.bf16.msra.mxu0 %v2188
    %2424 = vmatprep.subr.bf16.mxu0 %v2193
    %2425 = vmatpush1.bf16.msra.mxu0 %v2192
    %2426 = vmatprep.subr.bf16.mxu0 %v2197
    %2427 = vmatpush1.bf16.msra.mxu0 %v2196
    %2428 = vmatprep.subr.bf16.mxu0 %v2201
    %2429 = vmatpush1.bf16.msra.mxu0 %v2200
    %2430 = vmatprep.subr.bf16.mxu0 %v2205
    %2431 = vmatpush1.bf16.msra.mxu0 %v2204
    %2432 = vmatprep.mubr.bf16.mxu0 %v1753
    %2433 = vmatmul.mubr.bf16.gmra.mrb[0].mxu0 %v1752
    %v2434 = vpop.f32.mrb[0].mxu0
    %v2435 = vadd.f32 %v1644, %v2434
    %v2436 = vpop.f32.mrb[0].mxu0
    %v2437 = vadd.f32 %v1646, %v2436
    %v2438 = vpop.f32.mrb[0].mxu0
    %v2439 = vpop.f32.mrb[0].mxu0
    %2440 = vdwg.mxu0
    %2441 = vmatprep.subr.bf16.mxu0 %v2209
    %2442 = vmatpush1.bf16.msra.mxu0 %v2208
    %2443 = vmatprep.subr.bf16.mxu0 %v2213
    %2444 = vmatpush1.bf16.msra.mxu0 %v2212
    %2445 = vmatprep.subr.bf16.mxu0 %v2217
    %2446 = vmatpush1.bf16.msra.mxu0 %v2216
    %2447 = vmatprep.subr.bf16.mxu0 %v2221
    %2448 = vmatpush1.bf16.msra.mxu0 %v2220
    %2449 = vmatprep.subr.bf16.mxu0 %v2225
    %2450 = vmatpush1.bf16.msra.mxu0 %v2224
    %2451 = vmatprep.subr.bf16.mxu0 %v2229
    %2452 = vmatpush1.bf16.msra.mxu0 %v2228
    %2453 = vmatprep.subr.bf16.mxu0 %v2233
    %2454 = vmatpush1.bf16.msra.mxu0 %v2232
    %2455 = vmatprep.subr.bf16.mxu0 %v2237
    %2456 = vmatpush1.bf16.msra.mxu0 %v2236
    %2457 = vmatprep.subr.bf16.mxu0 %v2241
    %2458 = vmatpush1.bf16.msra.mxu0 %v2240
    %2459 = vmatprep.subr.bf16.mxu0 %v2245
    %2460 = vmatpush1.bf16.msra.mxu0 %v2244
    %2461 = vmatprep.subr.bf16.mxu0 %v2249
    %2462 = vmatpush1.bf16.msra.mxu0 %v2248
    %2463 = vmatprep.subr.bf16.mxu0 %v2253
    %2464 = vmatpush1.bf16.msra.mxu0 %v2252
    %2465 = vmatprep.subr.bf16.mxu0 %v2257
    %2466 = vmatpush1.bf16.msra.mxu0 %v2256
    %2467 = vmatprep.subr.bf16.mxu0 %v2261
    %2468 = vmatpush1.bf16.msra.mxu0 %v2260
    %2469 = vmatprep.subr.bf16.mxu0 %v2265
    %2470 = vmatpush1.bf16.msra.mxu0 %v2264
    %2471 = vmatprep.subr.bf16.mxu0 %v2269
    %2472 = vmatpush1.bf16.msra.mxu0 %v2268
    %2473 = vmatprep.mubr.bf16.mxu0 %v1755
    %2474 = vmatmul.mubr.bf16.gmra.mrb[0].mxu0 %v1754
    %v2475 = vpop.f32.mrb[0].mxu0
    %v2476 = vadd.f32 %v2435, %v2475
    %v2477 = vpop.f32.mrb[0].mxu0
    %v2478 = vadd.f32 %v2437, %v2477
    %v2479 = vpop.f32.mrb[0].mxu0
    %v2480 = vpop.f32.mrb[0].mxu0
    %2481 = vdwg.mxu0
    %2482 = vmatprep.subr.bf16.mxu0 %v2147
    %2483 = vmatpush1.bf16.msra.mxu0 %v2146
    %2484 = vmatprep.subr.bf16.mxu0 %v2151
    %2485 = vmatpush1.bf16.msra.mxu0 %v2150
    %2486 = vmatprep.subr.bf16.mxu0 %v2155
    %2487 = vmatpush1.bf16.msra.mxu0 %v2154
    %2488 = vmatprep.subr.bf16.mxu0 %v2159
    %2489 = vmatpush1.bf16.msra.mxu0 %v2158
    %2490 = vmatprep.subr.bf16.mxu0 %v2163
    %2491 = vmatpush1.bf16.msra.mxu0 %v2162
    %2492 = vmatprep.subr.bf16.mxu0 %v2167
    %2493 = vmatpush1.bf16.msra.mxu0 %v2166
    %2494 = vmatprep.subr.bf16.mxu0 %v2171
    %2495 = vmatpush1.bf16.msra.mxu0 %v2170
    %2496 = vmatprep.subr.bf16.mxu0 %v2175
    %2497 = vmatpush1.bf16.msra.mxu0 %v2174
    %2498 = vmatprep.subr.bf16.mxu0 %v2179
    %2499 = vmatpush1.bf16.msra.mxu0 %v2178
    %2500 = vmatprep.subr.bf16.mxu0 %v2183
    %2501 = vmatpush1.bf16.msra.mxu0 %v2182
    %2502 = vmatprep.subr.bf16.mxu0 %v2187
    %2503 = vmatpush1.bf16.msra.mxu0 %v2186
    %2504 = vmatprep.subr.bf16.mxu0 %v2191
    %2505 = vmatpush1.bf16.msra.mxu0 %v2190
    %2506 = vmatprep.subr.bf16.mxu0 %v2195
    %2507 = vmatpush1.bf16.msra.mxu0 %v2194
    %2508 = vmatprep.subr.bf16.mxu0 %v2199
    %2509 = vmatpush1.bf16.msra.mxu0 %v2198
    %2510 = vmatprep.subr.bf16.mxu0 %v2203
    %2511 = vmatpush1.bf16.msra.mxu0 %v2202
    %2512 = vmatprep.subr.bf16.mxu0 %v2207
    %2513 = vmatpush1.bf16.msra.mxu0 %v2206
    %2514 = vmatprep.mubr.bf16.mxu0 %v1753
    %2515 = vmatmul.mubr.bf16.gmra.mrb[0].mxu0 %v1752
    %v2516 = vpop.f32.mrb[0].mxu0
    %v2517 = vadd.f32 %v1726, %v2516
    %v2518 = vpop.f32.mrb[0].mxu0
    %v2519 = vadd.f32 %v1728, %v2518
    %v2520 = vpop.f32.mrb[0].mxu0
    %v2521 = vpop.f32.mrb[0].mxu0
    %2522 = vdwg.mxu0
    %2523 = vmatprep.subr.bf16.mxu0 %v2211
    %2524 = vmatpush1.bf16.msra.mxu0 %v2210
    %2525 = vmatprep.subr.bf16.mxu0 %v2215
    %2526 = vmatpush1.bf16.msra.mxu0 %v2214
    %2527 = vmatprep.subr.bf16.mxu0 %v2219
    %2528 = vmatpush1.bf16.msra.mxu0 %v2218
    %2529 = vmatprep.subr.bf16.mxu0 %v2223
    %2530 = vmatpush1.bf16.msra.mxu0 %v2222
    %2531 = vmatprep.subr.bf16.mxu0 %v2227
    %2532 = vmatpush1.bf16.msra.mxu0 %v2226
    %2533 = vmatprep.subr.bf16.mxu0 %v2231
    %2534 = vmatpush1.bf16.msra.mxu0 %v2230
    %2535 = vmatprep.subr.bf16.mxu0 %v2235
    %2536 = vmatpush1.bf16.msra.mxu0 %v2234
    %2537 = vmatprep.subr.bf16.mxu0 %v2239
    %2538 = vmatpush1.bf16.msra.mxu0 %v2238
    %2539 = vmatprep.subr.bf16.mxu0 %v2243
    %2540 = vmatpush1.bf16.msra.mxu0 %v2242
    %2541 = vmatprep.subr.bf16.mxu0 %v2247
    %2542 = vmatpush1.bf16.msra.mxu0 %v2246
    %2543 = vmatprep.subr.bf16.mxu0 %v2251
    %2544 = vmatpush1.bf16.msra.mxu0 %v2250
    %2545 = vmatprep.subr.bf16.mxu0 %v2255
    %2546 = vmatpush1.bf16.msra.mxu0 %v2254
    %2547 = vmatprep.subr.bf16.mxu0 %v2259
    %2548 = vmatpush1.bf16.msra.mxu0 %v2258
    %2549 = vmatprep.subr.bf16.mxu0 %v2263
    %2550 = vmatpush1.bf16.msra.mxu0 %v2262
    %2551 = vmatprep.subr.bf16.mxu0 %v2267
    %2552 = vmatpush1.bf16.msra.mxu0 %v2266
    %2553 = vmatprep.subr.bf16.mxu0 %v2271
    %2554 = vmatpush1.bf16.msra.mxu0 %v2270
    %2555 = vmatprep.mubr.bf16.mxu0 %v1755
    %2556 = vmatmul.mubr.bf16.gmra.mrb[0].mxu0 %v1754
    %v2557 = vpop.f32.mrb[0].mxu0
    %v2558 = vadd.f32 %v2517, %v2557
    %v2559 = vpop.f32.mrb[0].mxu0
    %v2560 = vadd.f32 %v2519, %v2559
    %v2561 = vpop.f32.mrb[0].mxu0
    %v2562 = vpop.f32.mrb[0].mxu0
    %2563 = vdwg.mxu0
    %s2564 = sld [smem:[#allocation2]]
    %v2565 = vstv %s2564
    %v2566 = vadd.f32 %v2476, %v2565
    %v2567 = vadd.f32 %v2478, %v2565
    %v2568 = vadd.f32 %v2558, %v2565
    %v2569 = vadd.f32 %v2560, %v2565
    %v2570 = vsub.f32 0.0, %v2566
    %v2571 = vsub.f32 0.0, %v2567
    %v2572 = vsub.f32 0.0, %v2568
    %v2573 = vsub.f32 0.0, %v2569
    %v2574 = vmul.f32 %v2570, 1.442695
    %v2575 = vpow.pop %v2574
    %v2576 = vmul.f32 %v2571, 1.442695
    %v2577 = vpow.pop %v2576
    %v2578 = vmul.f32 %v2572, 1.442695
    %v2579 = vpow.pop %v2578
    %v2580 = vmul.f32 %v2573, 1.442695
    %v2581 = vpow.pop %v2580
    %v2582 = vadd.f32 %v2575, 1.0
    %v2583 = vadd.f32 %v2577, 1.0
    %v2584 = vadd.f32 %v2579, 1.0
    %v2585 = vadd.f32 %v2581, 1.0
    %v2586 = vrcp.pop %v2582
    %v2587 = vmul.f32 1.0, %v2586
    %v2588 = vrcp.pop %v2583
    %v2589 = vmul.f32 1.0, %v2588
    %v2590 = vrcp.pop %v2584
    %v2591 = vmul.f32 1.0, %v2590
    %v2592 = vrcp.pop %v2585
    %v2593 = vmul.f32 1.0, %v2592
    %v2594 = vld [vmem:[%s5] sm:$0xff]
    %v2595 = vld [vmem:[%s5 + $0x8] sm:$0xff]
    %v2596 = vld [vmem:[%s5 + $0x10] sm:$0xff]
    %v2597 = vld [vmem:[%s5 + $0x18] sm:$0xff]
    %v2598 = vld [vmem:[%s5 + $0x80] sm:$0xff]
    %v2599 = vld [vmem:[%s5 + $0x88] sm:$0xff]
    %v2600 = vld [vmem:[%s5 + $0x90] sm:$0xff]
    %v2601 = vld [vmem:[%s5 + $0x98] sm:$0xff]
    %v2606 = vcombine.low %v2587, %v2589
    %v2607 = vcombine.low %v2591, %v2593
    %v2609 = vunpack.c.l.s4 1966171168
    %v2610 = vunpack.c.0.s8 %v2609
    %v2611 = vlaneseq
    %v2612 = vshrl.u32 %v2611, 7
    %v2613 = vsub.s32 %v2610, %v2612
    %v2614 = vrot.slane %v2606, %v2613
    %v2616 = vunpack.c.l.s4 1966171168
    %v2617 = vunpack.c.0.s8 %v2616
    %v2618 = vlaneseq
    %v2619 = vshrl.u32 %v2618, 7
    %v2620 = vsub.s32 %v2617, %v2619
    %v2621 = vrot.slane %v2607, %v2620
    %v2622 = vcombine.low %v2614, %v2621
    %v2623 = vcombine.high %v2614, %v2621
    %v2625 = vunpack.c.l.s4 1966171168
    %v2626 = vunpack.c.0.s8 %v2625
    %v2627 = vlaneseq
    %v2628 = vshrl.u32 %v2627, 7
    %v2629 = vsub.s32 %v2626, %v2628
    %v2630 = vrot.slane %v2622, %v2629
    %v2632 = vunpack.c.l.s4 1966171168
    %v2633 = vunpack.c.0.s8 %v2632
    %v2634 = vlaneseq
    %v2635 = vshrl.u32 %v2634, 7
    %v2636 = vsub.s32 %v2633, %v2635
    %v2637 = vrot.slane %v2623, %v2636
    %v2638 = vlaneseq
    %v2639 = vshrl.u32 %v2638, 7
    %v2640 = vsub.s32 0, %v2639
    %v2641 = vrot.slane %v2630, %v2640
    %v2642 = vlaneseq
    %v2643 = vshrl.u32 %v2642, 7
    %v2644 = vsub.s32 1, %v2643
    %v2645 = vrot.slane %v2630, %v2644
    %v2646 = vlaneseq
    %v2647 = vshrl.u32 %v2646, 7
    %v2648 = vsub.s32 2, %v2647
    %v2649 = vrot.slane %v2630, %v2648
    %v2650 = vlaneseq
    %v2651 = vshrl.u32 %v2650, 7
    %v2652 = vsub.s32 3, %v2651
    %v2653 = vrot.slane %v2630, %v2652
    %v2654 = vlaneseq
    %v2655 = vshrl.u32 %v2654, 7
    %v2656 = vsub.s32 0, %v2655
    %v2657 = vrot.slane %v2637, %v2656
    %v2658 = vlaneseq
    %v2659 = vshrl.u32 %v2658, 7
    %v2660 = vsub.s32 1, %v2659
    %v2661 = vrot.slane %v2637, %v2660
    %v2662 = vlaneseq
    %v2663 = vshrl.u32 %v2662, 7
    %v2664 = vsub.s32 2, %v2663
    %v2665 = vrot.slane %v2637, %v2664
    %v2666 = vlaneseq
    %v2667 = vshrl.u32 %v2666, 7
    %v2668 = vsub.s32 3, %v2667
    %v2669 = vrot.slane %v2637, %v2668
    %v2678 = vmul.f32 %v2594, %v2641
    %v2679 = vmul.f32 %v2595, %v2645
    %v2680 = vmul.f32 %v2596, %v2649
    %v2681 = vmul.f32 %v2597, %v2653
    %v2682 = vmul.f32 %v2598, %v2657
    %v2683 = vmul.f32 %v2599, %v2661
    %v2684 = vmul.f32 %v2600, %v2665
    %v2685 = vmul.f32 %v2601, %v2669
    %2686 = vst [vmem:[%s5] sm:$0xff] %v2678
    %2687 = vst [vmem:[%s5 + $0x8] sm:$0xff] %v2679
    %2688 = vst [vmem:[%s5 + $0x10] sm:$0xff] %v2680
    %2689 = vst [vmem:[%s5 + $0x18] sm:$0xff] %v2681
    %2690 = vst [vmem:[%s5 + $0x80] sm:$0xff] %v2682
    %2691 = vst [vmem:[%s5 + $0x88] sm:$0xff] %v2683
    %2692 = vst [vmem:[%s5 + $0x90] sm:$0xff] %v2684
    %2693 = vst [vmem:[%s5 + $0x98] sm:$0xff] %v2685
    %v2694 = vld [vmem:[%s5 + $0x20] sm:$0xff]
    %v2695 = vld [vmem:[%s5 + $0x28] sm:$0xff]
    %v2696 = vld [vmem:[%s5 + $0x30] sm:$0xff]
    %v2697 = vld [vmem:[%s5 + $0x38] sm:$0xff]
    %v2698 = vld [vmem:[%s5 + $0xa0] sm:$0xff]
    %v2699 = vld [vmem:[%s5 + $0xa8] sm:$0xff]
    %v2700 = vld [vmem:[%s5 + $0xb0] sm:$0xff]
    %v2701 = vld [vmem:[%s5 + $0xb8] sm:$0xff]
    %v2702 = vmul.f32 %v2694, %v2641
    %v2703 = vmul.f32 %v2695, %v2645
    %v2704 = vmul.f32 %v2696, %v2649
    %v2705 = vmul.f32 %v2697, %v2653
    %v2706 = vmul.f32 %v2698, %v2657
    %v2707 = vmul.f32 %v2699, %v2661
    %v2708 = vmul.f32 %v2700, %v2665
    %v2709 = vmul.f32 %v2701, %v2669
    %2710 = vst [vmem:[%s5 + $0x20] sm:$0xff] %v2702
    %2711 = vst [vmem:[%s5 + $0x28] sm:$0xff] %v2703
    %2712 = vst [vmem:[%s5 + $0x30] sm:$0xff] %v2704
    %2713 = vst [vmem:[%s5 + $0x38] sm:$0xff] %v2705
    %2714 = vst [vmem:[%s5 + $0xa0] sm:$0xff] %v2706
    %2715 = vst [vmem:[%s5 + $0xa8] sm:$0xff] %v2707
    %2716 = vst [vmem:[%s5 + $0xb0] sm:$0xff] %v2708
    %2717 = vst [vmem:[%s5 + $0xb8] sm:$0xff] %v2709
    %v2718 = vld [vmem:[%s5 + $0x40] sm:$0xff]
    %v2719 = vld [vmem:[%s5 + $0x48] sm:$0xff]
    %v2720 = vld [vmem:[%s5 + $0x50] sm:$0xff]
    %v2721 = vld [vmem:[%s5 + $0x58] sm:$0xff]
    %v2722 = vld [vmem:[%s5 + $0xc0] sm:$0xff]
    %v2723 = vld [vmem:[%s5 + $0xc8] sm:$0xff]
    %v2724 = vld [vmem:[%s5 + $0xd0] sm:$0xff]
    %v2725 = vld [vmem:[%s5 + $0xd8] sm:$0xff]
    %v2726 = vmul.f32 %v2718, %v2641
    %v2727 = vmul.f32 %v2719, %v2645
    %v2728 = vmul.f32 %v2720, %v2649
    %v2729 = vmul.f32 %v2721, %v2653
    %v2730 = vmul.f32 %v2722, %v2657
    %v2731 = vmul.f32 %v2723, %v2661
    %v2732 = vmul.f32 %v2724, %v2665
    %v2733 = vmul.f32 %v2725, %v2669
    %2734 = vst [vmem:[%s5 + $0x40] sm:$0xff] %v2726
    %2735 = vst [vmem:[%s5 + $0x48] sm:$0xff] %v2727
    %2736 = vst [vmem:[%s5 + $0x50] sm:$0xff] %v2728
    %2737 = vst [vmem:[%s5 + $0x58] sm:$0xff] %v2729
    %2738 = vst [vmem:[%s5 + $0xc0] sm:$0xff] %v2730
    %2739 = vst [vmem:[%s5 + $0xc8] sm:$0xff] %v2731
    %2740 = vst [vmem:[%s5 + $0xd0] sm:$0xff] %v2732
    %2741 = vst [vmem:[%s5 + $0xd8] sm:$0xff] %v2733
    %v2742 = vld [vmem:[%s5 + $0x60] sm:$0xff]
    %v2743 = vld [vmem:[%s5 + $0x68] sm:$0xff]
    %v2744 = vld [vmem:[%s5 + $0x70] sm:$0xff]
    %v2745 = vld [vmem:[%s5 + $0x78] sm:$0xff]
    %v2746 = vld [vmem:[%s5 + $0xe0] sm:$0xff]
    %v2747 = vld [vmem:[%s5 + $0xe8] sm:$0xff]
    %v2748 = vld [vmem:[%s5 + $0xf0] sm:$0xff]
    %v2749 = vld [vmem:[%s5 + $0xf8] sm:$0xff]
    %v2750 = vmul.f32 %v2742, %v2641
    %v2751 = vmul.f32 %v2743, %v2645
    %v2752 = vmul.f32 %v2744, %v2649
    %v2753 = vmul.f32 %v2745, %v2653
    %v2754 = vmul.f32 %v2746, %v2657
    %v2755 = vmul.f32 %v2747, %v2661
    %v2756 = vmul.f32 %v2748, %v2665
    %v2757 = vmul.f32 %v2749, %v2669
    %2758 = vst [vmem:[%s5 + $0x60] sm:$0xff] %v2750
    %2759 = vst [vmem:[%s5 + $0x68] sm:$0xff] %v2751
    %2760 = vst [vmem:[%s5 + $0x70] sm:$0xff] %v2752
    %2761 = vst [vmem:[%s5 + $0x78] sm:$0xff] %v2753
    %2762 = vst [vmem:[%s5 + $0xe0] sm:$0xff] %v2754
    %2763 = vst [vmem:[%s5 + $0xe8] sm:$0xff] %v2755
    %2764 = vst [vmem:[%s5 + $0xf0] sm:$0xff] %v2756
    %2765 = vst [vmem:[%s5 + $0xf8] sm:$0xff] %v2757
    // Predicated region
    $region26: #{cross_modal_cbam.1} parent=1 // pred_check
      _
    $region27: #{cross_modal_cbam.1} parent=1 // pred_check_branch
      %2767 = sbr.rel (0) target = $region29
    $region28: #{cross_modal_cbam.1} parent=1 // pred_region
      _
    $region29: #{cross_modal_cbam.1} parent=1 // pred_fallthru
      _
    // Predicated region
    $region30: #{cross_modal_cbam.1} parent=1 // pred_check
      _
    $region31: #{cross_modal_cbam.1} parent=1 // pred_check_branch
      %2769 = sbr.rel (0) target = $region33
    $region32: #{cross_modal_cbam.1} parent=1 // pred_region
      _
    $region33: #{cross_modal_cbam.1} parent=1 // pred_fallthru
      _
    %2770 = vsyncpa [#allocation4], 1

</llo_original>
